<compile_context>
chip_gen: v7x
topology: tpu7x:2x2x1
jax: 0.10.0
libtpu: 0.0.40
codegen_flags: <defaults>
</compile_context>

<pallas_src>
import functools

import jax
import jax.numpy as jnp
from jax.experimental import pallas as pl
from jax.experimental.pallas import tpu as pltpu


# ---------------------------------------------------------------------------
# Kernels
# ---------------------------------------------------------------------------

def _tile_h1_scores(h_ref, w1_ref, b1_ref, wab_ref, bab_ref, wc_ref, bc_ref):
    """Per-tile: h1 = ReLU(h@W1+b1); scores = sum((tanh⊙sigmoid of h1@Wab) * wc) + bc."""
    D = wc_ref.shape[1]

    h = h_ref[...].astype(jnp.bfloat16)                              # (T, E) bf16
    h1 = jnp.dot(h, w1_ref[...], preferred_element_type=jnp.float32) + b1_ref[...]
    h1 = jnp.maximum(h1, 0.0)                                        # (T, L) f32

    ab = jnp.dot(h1.astype(jnp.bfloat16), wab_ref[...],
                 preferred_element_type=jnp.float32) + bab_ref[...]  # (T, 2D) f32
    a = jnp.tanh(ab[:, :D])
    b = jax.nn.sigmoid(ab[:, D:])

    # (T, D) @ (D, 1) replaced by VPU multiply + lane reduction (1-wide MXU output wasteful).
    scores = jnp.sum(a * b * wc_ref[...], axis=-1, keepdims=True) + bc_ref[...]  # (T, 1)
    return h1, scores


def _mil_scores_kernel(n_ref, h_ref, w1_ref, b1_ref, wab_ref, bab_ref,
                       wc_ref, bc_ref, attn_raw_ref):
    """attention_only path: raw (pre-softmax) attention scores per tile, column layout."""
    del n_ref
    _, scores = _tile_h1_scores(h_ref, w1_ref, b1_ref, wab_ref, bab_ref, wc_ref, bc_ref)
    attn_raw_ref[...] = scores                                       # (T, 1)


def _mil_full_kernel(n_ref, h_ref, w1_ref, b1_ref, wab_ref, bab_ref, wc_ref, bc_ref,
                     wr_ref, br_ref,
                     attn_raw_ref, feat_ref, logrisk_ref, risk_ref,
                     m_sc, l_sc, acc_sc):
    i = pl.program_id(0)
    tile_n = h_ref.shape[0]

    @pl.when(i == 0)
    def _():
        m_sc[...] = jnp.full_like(m_sc, -jnp.inf)
        l_sc[...] = jnp.zeros_like(l_sc)
        acc_sc[...] = jnp.zeros_like(acc_sc)

    h1, scores = _tile_h1_scores(h_ref, w1_ref, b1_ref, wab_ref, bab_ref, wc_ref, bc_ref)

    # Raw (pre-softmax) attention scores for this tile (column layout, no transpose needed).
    attn_raw_ref[...] = scores

    # Mask rows beyond the true bag size (the last tile may run past N; that data is garbage).
    row = i * tile_n + jax.lax.broadcasted_iota(jnp.int32, (tile_n, 1), 0)
    valid = row < n_ref[0]
    h1 = jnp.where(valid, h1, 0.0)
    masked = jnp.where(valid, scores, -jnp.inf)

    # Online softmax accumulation: running max, running denominator, running sum of p*h1.
    m_prev = m_sc[...]
    m_new = jnp.maximum(m_prev, jnp.max(masked, axis=0, keepdims=True))  # (1, 1)
    alpha = jnp.exp(m_prev - m_new)                                      # (1, 1)
    p = jnp.exp(masked - m_new)                                          # (T, 1) f32
    l_sc[...] = alpha * l_sc[...] + jnp.sum(p, axis=0, keepdims=True)
    acc_sc[...] = alpha * acc_sc[...] + jnp.sum(p * h1, axis=0, keepdims=True)  # (1, L)
    m_sc[...] = m_new

    @pl.when(i == pl.num_programs(0) - 1)
    def _():
        inv_l = pl.reciprocal(l_sc[...], approx=True)                    # EUP, ~free
        M = acc_sc[...] * inv_l                                          # (1, L)
        feat_ref[...] = M
        # regressor (1, L) @ (L, 1) -> VPU multiply + lane reduction.
        lr = jnp.sum(M * wr_ref[...], axis=-1, keepdims=True) + br_ref[...]  # (1, 1)
        logrisk_ref[...] = lr
        risk_ref[...] = jnp.exp(lr)


# ---------------------------------------------------------------------------
# Wrapper
# ---------------------------------------------------------------------------

@functools.partial(jax.jit, static_argnames=("return_features", "attention_only"))
def mil_fc_reg_att(h, kp, return_features=False, attention_only=False):
    """h: (N, E) float array; kp: packed params from pack_params()."""
    N, E = h.shape
    L = kp["b1"].shape[-1]

    # Tile the instance dim. Single small tile for tiny bags; 512-row (MXU/lane aligned)
    # tiles for large bags.
    TILE = 512 if N > 512 else max(8, ((N + 7) // 8) * 8)
    n_pad = ((N + TILE - 1) // TILE) * TILE
    grid = (n_pad // TILE,)
    n_arr = jnp.array([N], dtype=jnp.int32)      # scalar-prefetched true bag size

    def const_spec(arr):                          # weights stay resident across grid steps
        return pl.BlockSpec(arr.shape, lambda i, n: (0, 0))

    h_spec = pl.BlockSpec((TILE, E), lambda i, n: (i, 0))
    attn_spec = pl.BlockSpec((TILE, 1), lambda i, n: (i, 0))

    common_in_specs = [
        h_spec,
        const_spec(kp["w1t"]), const_spec(kp["b1"]),
        const_spec(kp["wabt"]), const_spec(kp["bab"]),
        const_spec(kp["wc"]), const_spec(kp["bc"]),
    ]
    common_args = (n_arr, h, kp["w1t"], kp["b1"], kp["wabt"], kp["bab"], kp["wc"], kp["bc"])

    if attention_only:
        a_raw = pl.pallas_call(
            _mil_scores_kernel,
            out_shape=jax.ShapeDtypeStruct((n_pad, 1), jnp.float32),
            grid_spec=pltpu.PrefetchScalarGridSpec(
                num_scalar_prefetch=1, grid=grid,
                in_specs=common_in_specs, out_specs=attn_spec),
            compiler_params=pltpu.CompilerParams(
                dimension_semantics=("parallel",)),
        )(*common_args)
        return a_raw[:N].T                        # (1, N) pre-softmax, matches PyTorch

    in_specs = common_in_specs + [const_spec(kp["wr"]), const_spec(kp["br"])]
    args = common_args + (kp["wr"], kp["br"])
    out_shape = (
        jax.ShapeDtypeStruct((n_pad, 1), jnp.float32),   # raw attention scores (column)
        jax.ShapeDtypeStruct((1, L), jnp.float32),       # bag features M
        jax.ShapeDtypeStruct((1, 1), jnp.float32),       # log_risk
        jax.ShapeDtypeStruct((1, 1), jnp.float32),       # risk
    )
    out_specs = (
        attn_spec,
        pl.BlockSpec((1, L), lambda i, n: (0, 0)),
        pl.BlockSpec((1, 1), lambda i, n: (0, 0)),
        pl.BlockSpec((1, 1), lambda i, n: (0, 0)),
    )

    a_raw, feat, log_risks, risks = pl.pallas_call(
        _mil_full_kernel,
        out_shape=out_shape,
        grid_spec=pltpu.PrefetchScalarGridSpec(
            num_scalar_prefetch=1, grid=grid,
            in_specs=in_specs, out_specs=out_specs,
            scratch_shapes=[pltpu.VMEM((1, 1), jnp.float32),   # running max
                            pltpu.VMEM((1, 1), jnp.float32),   # running denom
                            pltpu.VMEM((1, L), jnp.float32)]), # running weighted h1 sum
        compiler_params=pltpu.CompilerParams(
            dimension_semantics=("arbitrary",)),               # reduction over the N-grid
    )(*args)

    # Per-tile normalized attention needs the global max/denominator; the kernel emits raw
    # scores (single pass) and this tiny (1, N) softmax finishes outside.
    A = jax.nn.softmax(a_raw[:N].T, axis=-1)
    results_dict = {"features": feat} if return_features else {}
    return log_risks, risks, results_dict, A


# ---------------------------------------------------------------------------
# Parameter init (mirrors nn.Linear) + one-time packing for the kernel
# ---------------------------------------------------------------------------

def init_params(key, embed_dim=1024, size_arg="small"):
    size_dict = {"small": [embed_dim, 512, 256], "big": [embed_dim, 512, 384]}
    E, L, D = size_dict[size_arg]
    ks = jax.random.split(key, 10)

    def linear(kw, kb, fan_in, fan_out):
        bound = 1.0 / (fan_in ** 0.5)
        w = jax.random.uniform(kw, (fan_out, fan_in), jnp.float32, -bound, bound)
        b = jax.random.uniform(kb, (fan_out,), jnp.float32, -bound, bound)
        return w, b

    w1, b1 = linear(ks[0], ks[1], E, L)   # fc Linear(E, 512)
    wa, ba = linear(ks[2], ks[3], L, D)   # attention_a Linear(512, 256)
    wb, bb = linear(ks[4], ks[5], L, D)   # attention_b Linear(512, 256)
    wc, bc = linear(ks[6], ks[7], D, 1)   # attention_c Linear(256, 1)
    wr, br = linear(ks[8], ks[9], L, 1)   # regressor   Linear(512, 1)
    return dict(w1=w1, b1=b1, wa=wa, ba=ba, wb=wb, bb=bb, wc=wc, bc=bc, wr=wr, br=br)


def pack_params(p):
    """One-time: transpose to (in, out), fuse Wa/Wb, cast matmul weights to bf16."""
    wab = jnp.concatenate([p["wa"].T, p["wb"].T], axis=1)          # (L, 2D)
    bab = jnp.concatenate([p["ba"], p["bb"]])[None, :]             # (1, 2D)
    return dict(
        w1t=p["w1"].T.astype(jnp.bfloat16),                        # (E, L) bf16
        b1=p["b1"][None, :].astype(jnp.float32),                   # (1, L)
        wabt=wab.astype(jnp.bfloat16),                             # (L, 2D) bf16
        bab=bab.astype(jnp.float32),                               # (1, 2D)
        wc=p["wc"].astype(jnp.float32),                            # (1, D) row for lane reduce
        bc=p["bc"].reshape(1, 1).astype(jnp.float32),              # (1, 1)
        wr=p["wr"].astype(jnp.float32),                            # (1, L) row for lane reduce
        br=p["br"].reshape(1, 1).astype(jnp.float32),              # (1, 1)
    )


# ---------------------------------------------------------------------------
# Pure-JAX f32 reference (correctness check only)
# ---------------------------------------------------------------------------

def _reference(h, p):
    hp = functools.partial(jnp.dot, precision=jax.lax.Precision.HIGHEST)
    h1 = jnp.maximum(hp(h, p["w1"].T) + p["b1"], 0.0)
    a = jnp.tanh(hp(h1, p["wa"].T) + p["ba"])
    b = jax.nn.sigmoid(hp(h1, p["wb"].T) + p["bb"])
    A_raw = (hp(a * b, p["wc"].T) + p["bc"]).T           # (1, N)
    A = jax.nn.softmax(A_raw, axis=1)
    M = hp(A, h1)                                        # (1, L)
    log_risks = hp(M, p["wr"].T) + p["br"]
    return log_risks, jnp.exp(log_risks), A, M, A_raw


if __name__ == "__main__":
    key = jax.random.PRNGKey(0)
    k_param, k_small, k_big = jax.random.split(key, 3)

    EMBED = 1024
    raw = init_params(k_param, embed_dim=EMBED, size_arg="small")
    kp = pack_params(raw)

    TOL = dict(rtol=2e-2, atol=2e-2)   # bf16 matmul inputs, f32 accumulation

    # --- small bag (single tile) ---
    N = 8
    h = jax.random.normal(k_small, (N, EMBED), jnp.float32)
    log_risks, risks, results, A = mil_fc_reg_att(h, kp, return_features=True)
    jax.block_until_ready((log_risks, risks, results["features"], A))

    ref_lr, ref_risk, ref_A, ref_M, ref_raw = _reference(h, raw)
    assert log_risks.shape == (1, 1) and risks.shape == (1, 1) and A.shape == (1, N)
    assert jnp.allclose(log_risks, ref_lr, **TOL)
    assert jnp.allclose(risks, ref_risk, **TOL)
    assert jnp.allclose(A, ref_A, **TOL)
    assert jnp.allclose(results["features"], ref_M, **TOL)

    # attention_only path (pre-softmax transposed scores, specialized kernel)
    A_only = mil_fc_reg_att(h, kp, attention_only=True)
    jax.block_until_ready(A_only)
    assert A_only.shape == (1, N)
    assert jnp.allclose(A_only, ref_raw, **TOL)

    # --- larger ragged bag (multi-tile grid + online softmax + row masking) ---
    N2 = 600
    h2 = jax.random.normal(k_big, (N2, EMBED), jnp.float32)
    lr2, r2, res2, A2 = mil_fc_reg_att(h2, kp, return_features=True)
    jax.block_until_ready((lr2, r2, res2["features"], A2))
    ref2 = _reference(h2, raw)
    assert jnp.allclose(lr2, ref2[0], **TOL)
    assert jnp.allclose(r2, ref2[1], **TOL)
    assert jnp.allclose(A2, ref2[2], **TOL)
    assert jnp.allclose(res2["features"], ref2[3], **TOL)

    print("KERNEL_OK")
</pallas_src>

<mosaic_0001>
module attributes {stable_mosaic.version = 11 : i64} {
  func.func @_mil_full_kernel(%arg0: i32, %arg1: memref<1xi32, #tpu.memory_space<smem>>, %arg2: memref<8x1024xf32, #tpu.memory_space<vmem>>, %arg3: memref<1024x512xbf16, #tpu.memory_space<vmem>>, %arg4: memref<1x512xf32, #tpu.memory_space<vmem>>, %arg5: memref<512x512xbf16, #tpu.memory_space<vmem>>, %arg6: memref<1x512xf32, #tpu.memory_space<vmem>>, %arg7: memref<1x256xf32, #tpu.memory_space<vmem>>, %arg8: memref<1x1xf32, #tpu.memory_space<vmem>>, %arg9: memref<1x512xf32, #tpu.memory_space<vmem>>, %arg10: memref<1x1xf32, #tpu.memory_space<vmem>>, %arg11: memref<8x1xf32, #tpu.memory_space<vmem>>, %arg12: memref<1x512xf32, #tpu.memory_space<vmem>>, %arg13: memref<1x1xf32, #tpu.memory_space<vmem>>, %arg14: memref<1x1xf32, #tpu.memory_space<vmem>>, %arg15: memref<1x1xf32, #tpu.memory_space<vmem>>, %arg16: memref<1x1xf32, #tpu.memory_space<vmem>>, %arg17: memref<1x512xf32, #tpu.memory_space<vmem>>) attributes {dimension_semantics = [#tpu.dimension_semantics<arbitrary>], iteration_bounds = array<i64: 1>, scalar_prefetch = 1 : i64, scratch_operands = 3 : i64, tpu.core_type = #tpu.core_type<tc>, window_params = [{transform_indices = @transform_0, window_bounds = array<i64: 8, 1024>}, {pipeline_mode = #tpu.pipeline_mode<synchronous>, transform_indices = @transform_1, window_bounds = array<i64: 1024, 512>}, {pipeline_mode = #tpu.pipeline_mode<synchronous>, transform_indices = @transform_2, window_bounds = array<i64: 1, 512>}, {pipeline_mode = #tpu.pipeline_mode<synchronous>, transform_indices = @transform_3, window_bounds = array<i64: 512, 512>}, {pipeline_mode = #tpu.pipeline_mode<synchronous>, transform_indices = @transform_4, window_bounds = array<i64: 1, 512>}, {pipeline_mode = #tpu.pipeline_mode<synchronous>, transform_indices = @transform_5, window_bounds = array<i64: 1, 256>}, {pipeline_mode = #tpu.pipeline_mode<synchronous>, transform_indices = @transform_6, window_bounds = array<i64: 1, 1>}, {pipeline_mode = #tpu.pipeline_mode<synchronous>, transform_indices = @transform_7, window_bounds = array<i64: 1, 512>}, {pipeline_mode = #tpu.pipeline_mode<synchronous>, transform_indices = @transform_8, window_bounds = array<i64: 1, 1>}, {transform_indices = @transform_9, window_bounds = array<i64: 8, 1>}, {pipeline_mode = #tpu.pipeline_mode<synchronous>, transform_indices = @transform_10, window_bounds = array<i64: 1, 512>}, {pipeline_mode = #tpu.pipeline_mode<synchronous>, transform_indices = @transform_11, window_bounds = array<i64: 1, 1>}, {pipeline_mode = #tpu.pipeline_mode<synchronous>, transform_indices = @transform_12, window_bounds = array<i64: 1, 1>}]} {
    %c0_i32 = arith.constant 0 : i32
    %0 = arith.cmpi eq, %arg0, %c0_i32 : i32
    %1 = arith.extui %0 : i1 to i32
    %c0_i32_0 = arith.constant 0 : i32
    %2 = arith.cmpi ne, %1, %c0_i32_0 : i32
    scf.if %2 {
      %cst_40 = arith.constant 0xFF800000 : f32
      %77 = vector.broadcast %cst_40 : f32 to vector<1x1xf32>
      %c0_41 = arith.constant 0 : index
      %c0_42 = arith.constant 0 : index
      %78 = vector.load %arg15[%c0_41, %c0_42] : memref<1x1xf32, #tpu.memory_space<vmem>>, vector<1x1xf32>
      tpu.vector_store %arg15[%c0_41, %c0_42], %77 {strides = array<i32>} : memref<1x1xf32, #tpu.memory_space<vmem>>, vector<1x1xf32>,
      %cst_43 = arith.constant 0.000000e+00 : f32
      %79 = vector.broadcast %cst_43 : f32 to vector<1x1xf32>
      %c0_44 = arith.constant 0 : index
      %c0_45 = arith.constant 0 : index
      %80 = vector.load %arg16[%c0_44, %c0_45] : memref<1x1xf32, #tpu.memory_space<vmem>>, vector<1x1xf32>
      tpu.vector_store %arg16[%c0_44, %c0_45], %79 {strides = array<i32>} : memref<1x1xf32, #tpu.memory_space<vmem>>, vector<1x1xf32>,
      %cst_46 = arith.constant 0.000000e+00 : f32
      %81 = vector.broadcast %cst_46 : f32 to vector<1x512xf32>
      %c0_47 = arith.constant 0 : index
      %c0_48 = arith.constant 0 : index
      %82 = vector.load %arg17[%c0_47, %c0_48] : memref<1x512xf32, #tpu.memory_space<vmem>>, vector<1x512xf32>
      tpu.vector_store %arg17[%c0_47, %c0_48], %81 {strides = array<i32>} : memref<1x512xf32, #tpu.memory_space<vmem>>, vector<1x512xf32>,
    } else {
    }
    %c0 = arith.constant 0 : index
    %c0_1 = arith.constant 0 : index
    %3 = vector.load %arg2[%c0, %c0_1] : memref<8x1024xf32, #tpu.memory_space<vmem>>, vector<8x1024xf32>
    %4 = arith.truncf %3 : vector<8x1024xf32> to vector<8x1024xbf16>
    %c0_2 = arith.constant 0 : index
    %c0_3 = arith.constant 0 : index
    %5 = vector.load %arg3[%c0_2, %c0_3] : memref<1024x512xbf16, #tpu.memory_space<vmem>>, vector<1024x512xbf16>
    %cst = arith.constant dense<0.000000e+00> : vector<8x512xf32>
    %6 = tpu.matmul %4, %5, %cst {dimension_numbers = #tpu.dot_dimension_numbers<[1], [0], [0], [1], [0, 0, 1, 1], [], []>} : vector<8x1024xbf16>, vector<1024x512xbf16>, vector<8x512xf32> -> vector<8x512xf32>
    %c0_4 = arith.constant 0 : index
    %c0_5 = arith.constant 0 : index
    %7 = vector.load %arg4[%c0_4, %c0_5] : memref<1x512xf32, #tpu.memory_space<vmem>>, vector<1x512xf32>
    %8 = vector.broadcast %7 : vector<1x512xf32> to vector<8x512xf32>
    %9 = arith.addf %6, %8 : vector<8x512xf32>
    %cst_6 = arith.constant 0.000000e+00 : f32
    %10 = vector.broadcast %cst_6 : f32 to vector<8x512xf32>
    %11 = arith.maximumf %9, %10 : vector<8x512xf32>
    %12 = arith.truncf %11 : vector<8x512xf32> to vector<8x512xbf16>
    %c0_7 = arith.constant 0 : index
    %c0_8 = arith.constant 0 : index
    %13 = vector.load %arg5[%c0_7, %c0_8] : memref<512x512xbf16, #tpu.memory_space<vmem>>, vector<512x512xbf16>
    %cst_9 = arith.constant dense<0.000000e+00> : vector<8x512xf32>
    %14 = tpu.matmul %12, %13, %cst_9 {dimension_numbers = #tpu.dot_dimension_numbers<[1], [0], [0], [1], [0, 0, 1, 1], [], []>} : vector<8x512xbf16>, vector<512x512xbf16>, vector<8x512xf32> -> vector<8x512xf32>
    %c0_10 = arith.constant 0 : index
    %c0_11 = arith.constant 0 : index
    %15 = vector.load %arg6[%c0_10, %c0_11] : memref<1x512xf32, #tpu.memory_space<vmem>>, vector<1x512xf32>
    %16 = vector.broadcast %15 : vector<1x512xf32> to vector<8x512xf32>
    %17 = arith.addf %14, %16 : vector<8x512xf32>
    %18 = vector.extract_strided_slice %17 {offsets = [0, 0], sizes = [8, 256], strides = [1, 1]} : vector<8x512xf32> to vector<8x256xf32>
    %19 = math.tanh %18 : vector<8x256xf32>
    %20 = vector.extract_strided_slice %17 {offsets = [0, 256], sizes = [8, 256], strides = [1, 1]} : vector<8x512xf32> to vector<8x256xf32>
    %21 = arith.negf %20 : vector<8x256xf32>
    %22 = math.exp %21 : vector<8x256xf32>
    %cst_12 = arith.constant 1.000000e+00 : f32
    %23 = vector.broadcast %cst_12 : f32 to vector<8x256xf32>
    %24 = arith.addf %23, %22 : vector<8x256xf32>
    %25 = arith.divf %23, %24 : vector<8x256xf32>
    %26 = arith.mulf %19, %25 : vector<8x256xf32>
    %c0_13 = arith.constant 0 : index
    %c0_14 = arith.constant 0 : index
    %27 = vector.load %arg7[%c0_13, %c0_14] : memref<1x256xf32, #tpu.memory_space<vmem>>, vector<1x256xf32>
    %28 = vector.broadcast %27 : vector<1x256xf32> to vector<8x256xf32>
    %29 = arith.mulf %26, %28 : vector<8x256xf32>
    %cst_15 = arith.constant dense<0.000000e+00> : vector<8xf32>
    %30 = vector.multi_reduction <add>, %29, %cst_15 [1] : vector<8x256xf32> to vector<8xf32>
    %31 = vector.shape_cast %30 : vector<8xf32> to vector<8x1xf32>
    %c0_16 = arith.constant 0 : index
    %c0_17 = arith.constant 0 : index
    %32 = vector.load %arg8[%c0_16, %c0_17] : memref<1x1xf32, #tpu.memory_space<vmem>>, vector<1x1xf32>
    %33 = vector.broadcast %32 : vector<1x1xf32> to vector<8x1xf32>
    %34 = arith.addf %31, %33 : vector<8x1xf32>
    %c0_18 = arith.constant 0 : index
    %c0_19 = arith.constant 0 : index
    %35 = vector.load %arg11[%c0_18, %c0_19] : memref<8x1xf32, #tpu.memory_space<vmem>>, vector<8x1xf32>
    tpu.vector_store %arg11[%c0_18, %c0_19], %34 {strides = array<i32>} : memref<8x1xf32, #tpu.memory_space<vmem>>, vector<8x1xf32>,
    %c8_i32 = arith.constant 8 : i32
    %36 = arith.muli %arg0, %c8_i32 : i32
    %37 = tpu.iota {dimensions = array<i32: 0>} : vector<8x1xi32>
    %38 = vector.broadcast %36 : i32 to vector<8x1xi32>
    %39 = arith.addi %38, %37 : vector<8x1xi32>
    %c0_20 = arith.constant 0 : index
    %40 = memref.load %arg1[%c0_20] : memref<1xi32, #tpu.memory_space<smem>>
    %41 = vector.broadcast %40 : i32 to vector<8x1xi32>
    %42 = arith.cmpi slt, %39, %41 : vector<8x1xi32>
    %cst_21 = arith.constant 0.000000e+00 : f32
    %43 = vector.shape_cast %42 : vector<8x1xi1> to vector<8x1xi1>
    %44 = vector.broadcast %43 : vector<8x1xi1> to vector<8x512xi1>
    %45 = vector.broadcast %cst_21 : f32 to vector<8x512xf32>
    %46 = arith.select %44, %11, %45 : vector<8x512xi1>, vector<8x512xf32>
    %cst_22 = arith.constant 0xFF800000 : f32
    %47 = vector.broadcast %cst_22 : f32 to vector<8x1xf32>
    %48 = arith.select %42, %34, %47 : vector<8x1xi1>, vector<8x1xf32>
    %c0_23 = arith.constant 0 : index
    %c0_24 = arith.constant 0 : index
    %49 = vector.load %arg15[%c0_23, %c0_24] : memref<1x1xf32, #tpu.memory_space<vmem>>, vector<1x1xf32>
    %cst_25 = arith.constant dense<0xFF800000> : vector<1xf32>
    %50 = vector.multi_reduction <maximumf>, %48, %cst_25 [0] : vector<8x1xf32> to vector<1xf32>
    %51 = vector.shape_cast %50 : vector<1xf32> to vector<1x1xf32>
    %52 = arith.maximumf %49, %51 : vector<1x1xf32>
    %53 = arith.subf %49, %52 : vector<1x1xf32>
    %54 = math.exp %53 : vector<1x1xf32>
    %55 = vector.broadcast %52 : vector<1x1xf32> to vector<8x1xf32>
    %56 = arith.subf %48, %55 : vector<8x1xf32>
    %57 = math.exp %56 : vector<8x1xf32>
    %c0_26 = arith.constant 0 : index
    %c0_27 = arith.constant 0 : index
    %58 = vector.load %arg16[%c0_26, %c0_27] : memref<1x1xf32, #tpu.memory_space<vmem>>, vector<1x1xf32>
    %59 = arith.mulf %54, %58 : vector<1x1xf32>
    %cst_28 = arith.constant dense<0.000000e+00> : vector<1xf32>
    %60 = vector.multi_reduction <add>, %57, %cst_28 [0] : vector<8x1xf32> to vector<1xf32>
    %61 = vector.shape_cast %60 : vector<1xf32> to vector<1x1xf32>
    %62 = arith.addf %59, %61 : vector<1x1xf32>
    %c0_29 = arith.constant 0 : index
    %c0_30 = arith.constant 0 : index
    %63 = vector.load %arg16[%c0_29, %c0_30] : memref<1x1xf32, #tpu.memory_space<vmem>>, vector<1x1xf32>
    tpu.vector_store %arg16[%c0_29, %c0_30], %62 {strides = array<i32>} : memref<1x1xf32, #tpu.memory_space<vmem>>, vector<1x1xf32>,
    %c0_31 = arith.constant 0 : index
    %c0_32 = arith.constant 0 : index
    %64 = vector.load %arg17[%c0_31, %c0_32] : memref<1x512xf32, #tpu.memory_space<vmem>>, vector<1x512xf32>
    %65 = vector.broadcast %54 : vector<1x1xf32> to vector<1x512xf32>
    %66 = arith.mulf %65, %64 : vector<1x512xf32>
    %67 = vector.broadcast %57 : vector<8x1xf32> to vector<8x512xf32>
    %68 = arith.mulf %67, %46 : vector<8x512xf32>
    %cst_33 = arith.constant dense<0.000000e+00> : vector<512xf32>
    %69 = vector.multi_reduction <add>, %68, %cst_33 [0] : vector<8x512xf32> to vector<512xf32>
    %70 = vector.shape_cast %69 : vector<512xf32> to vector<1x512xf32>
    %71 = arith.addf %66, %70 : vector<1x512xf32>
    %c0_34 = arith.constant 0 : index
    %c0_35 = arith.constant 0 : index
    %72 = vector.load %arg17[%c0_34, %c0_35] : memref<1x512xf32, #tpu.memory_space<vmem>>, vector<1x512xf32>
    tpu.vector_store %arg17[%c0_34, %c0_35], %71 {strides = array<i32>} : memref<1x512xf32, #tpu.memory_space<vmem>>, vector<1x512xf32>,
    %c0_36 = arith.constant 0 : index
    %c0_37 = arith.constant 0 : index
    %73 = vector.load %arg15[%c0_36, %c0_37] : memref<1x1xf32, #tpu.memory_space<vmem>>, vector<1x1xf32>
    tpu.vector_store %arg15[%c0_36, %c0_37], %52 {strides = array<i32>} : memref<1x1xf32, #tpu.memory_space<vmem>>, vector<1x1xf32>,
    %c0_i32_38 = arith.constant 0 : i32
    %74 = arith.cmpi eq, %arg0, %c0_i32_38 : i32
    %75 = arith.extui %74 : i1 to i32
    %c0_i32_39 = arith.constant 0 : i32
    %76 = arith.cmpi ne, %75, %c0_i32_39 : i32
    scf.if %76 {
      %c0_40 = arith.constant 0 : index
      %c0_41 = arith.constant 0 : index
      %77 = vector.load %arg16[%c0_40, %c0_41] : memref<1x1xf32, #tpu.memory_space<vmem>>, vector<1x1xf32>
      %78 = tpu.reciprocal %77 {approx = true} : vector<1x1xf32> -> vector<1x1xf32>
      %c0_42 = arith.constant 0 : index
      %c0_43 = arith.constant 0 : index
      %79 = vector.load %arg17[%c0_42, %c0_43] : memref<1x512xf32, #tpu.memory_space<vmem>>, vector<1x512xf32>
      %80 = vector.broadcast %78 : vector<1x1xf32> to vector<1x512xf32>
      %81 = arith.mulf %79, %80 : vector<1x512xf32>
      %c0_44 = arith.constant 0 : index
      %c0_45 = arith.constant 0 : index
      %82 = vector.load %arg12[%c0_44, %c0_45] : memref<1x512xf32, #tpu.memory_space<vmem>>, vector<1x512xf32>
      tpu.vector_store %arg12[%c0_44, %c0_45], %81 {strides = array<i32>} : memref<1x512xf32, #tpu.memory_space<vmem>>, vector<1x512xf32>,
      %c0_46 = arith.constant 0 : index
      %c0_47 = arith.constant 0 : index
      %83 = vector.load %arg9[%c0_46, %c0_47] : memref<1x512xf32, #tpu.memory_space<vmem>>, vector<1x512xf32>
      %84 = arith.mulf %81, %83 : vector<1x512xf32>
      %cst_48 = arith.constant dense<0.000000e+00> : vector<1xf32>
      %85 = vector.multi_reduction <add>, %84, %cst_48 [1] : vector<1x512xf32> to vector<1xf32>
      %86 = vector.shape_cast %85 : vector<1xf32> to vector<1x1xf32>
      %c0_49 = arith.constant 0 : index
      %c0_50 = arith.constant 0 : index
      %87 = vector.load %arg10[%c0_49, %c0_50] : memref<1x1xf32, #tpu.memory_space<vmem>>, vector<1x1xf32>
      %88 = arith.addf %86, %87 : vector<1x1xf32>
      %c0_51 = arith.constant 0 : index
      %c0_52 = arith.constant 0 : index
      %89 = vector.load %arg13[%c0_51, %c0_52] : memref<1x1xf32, #tpu.memory_space<vmem>>, vector<1x1xf32>
      tpu.vector_store %arg13[%c0_51, %c0_52], %88 {strides = array<i32>} : memref<1x1xf32, #tpu.memory_space<vmem>>, vector<1x1xf32>,
      %90 = math.exp %88 : vector<1x1xf32>
      %c0_53 = arith.constant 0 : index
      %c0_54 = arith.constant 0 : index
      %91 = vector.load %arg14[%c0_53, %c0_54] : memref<1x1xf32, #tpu.memory_space<vmem>>, vector<1x1xf32>
      tpu.vector_store %arg14[%c0_53, %c0_54], %90 {strides = array<i32>} : memref<1x1xf32, #tpu.memory_space<vmem>>, vector<1x1xf32>,
    } else {
    }
    return
  }
  func.func @transform_0(%arg0: i32, %arg1: memref<1xi32, #tpu.memory_space<smem>>) -> (i32, i32) {
    %c0_i32 = arith.constant 0 : i32
    %c0_i32_0 = arith.constant 0 : i32
    return %arg0, %c0_i32 : i32, i32
  }
  func.func @transform_1(%arg0: i32, %arg1: memref<1xi32, #tpu.memory_space<smem>>) -> (i32, i32) {
    %c0_i32 = arith.constant 0 : i32
    %c0_i32_0 = arith.constant 0 : i32
    %c0_i32_1 = arith.constant 0 : i32
    return %c0_i32, %c0_i32_0 : i32, i32
  }
  func.func @transform_2(%arg0: i32, %arg1: memref<1xi32, #tpu.memory_space<smem>>) -> (i32, i32) {
    %c0_i32 = arith.constant 0 : i32
    %c0_i32_0 = arith.constant 0 : i32
    %c0_i32_1 = arith.constant 0 : i32
    return %c0_i32, %c0_i32_0 : i32, i32
  }
  func.func @transform_3(%arg0: i32, %arg1: memref<1xi32, #tpu.memory_space<smem>>) -> (i32, i32) {
    %c0_i32 = arith.constant 0 : i32
    %c0_i32_0 = arith.constant 0 : i32
    %c0_i32_1 = arith.constant 0 : i32
    return %c0_i32, %c0_i32_0 : i32, i32
  }
  func.func @transform_4(%arg0: i32, %arg1: memref<1xi32, #tpu.memory_space<smem>>) -> (i32, i32) {
    %c0_i32 = arith.constant 0 : i32
    %c0_i32_0 = arith.constant 0 : i32
    %c0_i32_1 = arith.constant 0 : i32
    return %c0_i32, %c0_i32_0 : i32, i32
  }
  func.func @transform_5(%arg0: i32, %arg1: memref<1xi32, #tpu.memory_space<smem>>) -> (i32, i32) {
    %c0_i32 = arith.constant 0 : i32
    %c0_i32_0 = arith.constant 0 : i32
    %c0_i32_1 = arith.constant 0 : i32
    return %c0_i32, %c0_i32_0 : i32, i32
  }
  func.func @transform_6(%arg0: i32, %arg1: memref<1xi32, #tpu.memory_space<smem>>) -> (i32, i32) {
    %c0_i32 = arith.constant 0 : i32
    %c0_i32_0 = arith.constant 0 : i32
    %c0_i32_1 = arith.constant 0 : i32
    return %c0_i32, %c0_i32_0 : i32, i32
  }
  func.func @transform_7(%arg0: i32, %arg1: memref<1xi32, #tpu.memory_space<smem>>) -> (i32, i32) {
    %c0_i32 = arith.constant 0 : i32
    %c0_i32_0 = arith.constant 0 : i32
    %c0_i32_1 = arith.constant 0 : i32
    return %c0_i32, %c0_i32_0 : i32, i32
  }
  func.func @transform_8(%arg0: i32, %arg1: memref<1xi32, #tpu.memory_space<smem>>) -> (i32, i32) {
    %c0_i32 = arith.constant 0 : i32
    %c0_i32_0 = arith.constant 0 : i32
    %c0_i32_1 = arith.constant 0 : i32
    return %c0_i32, %c0_i32_0 : i32, i32
  }
  func.func @transform_9(%arg0: i32, %arg1: memref<1xi32, #tpu.memory_space<smem>>) -> (i32, i32) {
    %c0_i32 = arith.constant 0 : i32
    %c0_i32_0 = arith.constant 0 : i32
    return %arg0, %c0_i32 : i32, i32
  }
  func.func @transform_10(%arg0: i32, %arg1: memref<1xi32, #tpu.memory_space<smem>>) -> (i32, i32) {
    %c0_i32 = arith.constant 0 : i32
    %c0_i32_0 = arith.constant 0 : i32
    %c0_i32_1 = arith.constant 0 : i32
    return %c0_i32, %c0_i32_0 : i32, i32
  }
  func.func @transform_11(%arg0: i32, %arg1: memref<1xi32, #tpu.memory_space<smem>>) -> (i32, i32) {
    %c0_i32 = arith.constant 0 : i32
    %c0_i32_0 = arith.constant 0 : i32
    %c0_i32_1 = arith.constant 0 : i32
    return %c0_i32, %c0_i32_0 : i32, i32
  }
  func.func @transform_12(%arg0: i32, %arg1: memref<1xi32, #tpu.memory_space<smem>>) -> (i32, i32) {
    %c0_i32 = arith.constant 0 : i32
    %c0_i32_0 = arith.constant 0 : i32
    %c0_i32_1 = arith.constant 0 : i32
    return %c0_i32, %c0_i32_0 : i32, i32
  }
}

</mosaic_0001>

<llo_original>
// kernel: mil_fc_reg_att.1
$region0: #{mil_fc_reg_att.1}
  #allocation0 [shape = 'u32[]', space=smem, size = 0x4, offset = 0x4, fixed_abs, tag = 'smem constant byte address 0x4 - core index']
  #allocation1 [shape = 'u32[144,128]{1,0:T(1,128)}', space=vmem, size = 0x12000, scoped, tag = 'internal scratch']
  #allocation2 [shape = 'f32[1,1]{1,0:T(1,128)}', space=vmem, size = 0x200, scoped, tag = 'scratch operand']
  #allocation3 [shape = 'f32[1,1]{1,0:T(1,128)}', space=vmem, size = 0x200, scoped, tag = 'scratch operand']
  #allocation4 [shape = 'f32[1,512]{1,0:T(1,128)}', space=vmem, size = 0x800, scoped, tag = 'scratch operand']
  #allocation5 [shape = 's32[1]{0}', space=sflag, size = 0x4, scoped, tag = 'scoped memory for mil_fc_reg_att.1']
  #allocation6 [shape = 's32[1]{0:T(128)S(6)}', space=smem, size = 0x200, scoped, tag = 'prefetched SMEM operand 0']
  #allocation7 [shape = 'f32[1,1]{1,0:T(1,128)S(1)}', space=vmem, size = 0x200, scoped, tag = 'scoped memory for mil_fc_reg_att.1']
  #allocation8 [shape = 'f32[1,1]{1,0:T(1,128)S(1)}', space=vmem, size = 0x200, scoped, tag = 'scoped memory for mil_fc_reg_att.1']
  %s0 = inlined_call_operand.<no memory space> [shape: s32[1], index: 0, kind: input, shape index: {}]
  %s1 = inlined_call_operand.hbm [shape: f32[8,1024], index: 1, kind: input, shape index: {}]
  %s2 = inlined_call_operand.hbm [shape: bf16[1024,512], index: 2, kind: input, shape index: {}]
  %s3 = inlined_call_operand.vmem [shape: f32[1,512], index: 3, kind: input, shape index: {}]
  %s4 = inlined_call_operand.hbm [shape: bf16[512,512], index: 4, kind: input, shape index: {}]
  %s5 = inlined_call_operand.vmem [shape: f32[1,512], index: 5, kind: input, shape index: {}]
  %s6 = inlined_call_operand.vmem [shape: f32[1,256], index: 6, kind: input, shape index: {}]
  %s7 = inlined_call_operand.<no memory space> [shape: f32[1,1], index: 7, kind: input, shape index: {}]
  %s8 = inlined_call_operand.hbm [shape: f32[1,512], index: 8, kind: input, shape index: {}]
  %s9 = inlined_call_operand.<no memory space> [shape: f32[1,1], index: 9, kind: input, shape index: {}]
  %s10 = inlined_call_operand.vmem [shape: f32[8,1], index: 10, kind: output, shape index: {0}]
  %s11 = inlined_call_operand.hbm [shape: f32[1,512], index: 11, kind: output, shape index: {1}]
  %s12 = inlined_call_operand.hbm [shape: f32[1,1], index: 12, kind: output, shape index: {2}]
  %s13 = inlined_call_operand.hbm [shape: f32[1,1], index: 13, kind: output, shape index: {3}]
  %14 = xla_tuple %s10, %s11, %s12, %s13
  %s15 = sld [smem:[#allocation0]]
  $region94: #{mil_fc_reg_att.1} parent=0
    _
  %s17 = ssub.s32 1, %s15
  %s18 = scalar_select 0, %s17, %s15
  %19 = sst [smem:[#allocation6]] %s0
  %v20 = vstv %s7
  %21 = vst [vmem:[#allocation7] sm:$0x1] %v20
  %v22 = vstv %s9
  %23 = vst [vmem:[#allocation8] sm:$0x1] %v22
  $region1: #{mil_fc_reg_att.1} parent=0
    #allocation9 [shape = 'u8[32768]{0}', space=vmem, size = 0x8000, scoped, tag = 'input window, operand 1, single buffered']
    #allocation10 [shape = 's32[1]{0}', space=sflag, size = 0x4, scoped, tag = 'scoped memory for mil_fc_reg_att.1']
    #allocation11 [shape = 's32[1]{0}', space=sflag, size = 0x4, scoped, tag = 'scoped memory for mil_fc_reg_att.1']
    #allocation12 [shape = 'u8[1048576]{0}', space=vmem, size = 0x100000, scoped, tag = 'input window, operand 2, single buffered']
    #allocation13 [shape = 's32[1]{0}', space=sflag, size = 0x4, scoped, tag = 'scoped memory for mil_fc_reg_att.1']
    #allocation14 [shape = 'u8[524288]{0}', space=vmem, size = 0x80000, scoped, tag = 'input window, operand 4, single buffered']
    #allocation15 [shape = 'u8[2048]{0}', space=vmem, size = 0x800, scoped, tag = 'input window, operand 8, single buffered']
    #allocation16 [shape = 's32[1]{0}', space=sflag, size = 0x4, scoped, tag = 'scoped memory for mil_fc_reg_att.1']
    #allocation17 [shape = 'u8[2048]{0}', space=vmem, size = 0x800, scoped, tag = 'output window, operand 1, single buffered']
    #allocation18 [shape = 'u8[512]{0}', space=vmem, size = 0x400, scoped, tag = 'output window, operand 2, single buffered']
    #allocation19 [shape = 's32[1]{0}', space=sflag, size = 0x4, scoped, tag = 'scoped memory for mil_fc_reg_att.1']
    #allocation20 [shape = 'u8[512]{0}', space=vmem, size = 0x400, scoped, tag = 'output window, operand 3, single buffered']
    %24 = vsyncpa [#allocation10], 0
    %25 = vsyncpa [#allocation13], 0
    %26 = vsyncpa [#allocation16], 0
    %27 = vsyncpa [#allocation11], 0
    %28 = vsyncpa [#allocation19], 0
    // Predicated region
    $region2: #{mil_fc_reg_att.1} parent=1 // pred_check
      _
    $region3: #{mil_fc_reg_att.1} parent=1 // pred_check_branch
      %30 = sbr.rel (0) target = $region5
    $region4: #{mil_fc_reg_att.1} parent=1 // pred_region
      %s32 = ssub.s32 1024, 1024
      %33 = vsyncadd [#allocation10], %s32
      %s35 = sshll.u32 [#allocation9], 4
      %s36 = int_to_ptr.vmem [resolvable:$true] %s35
      %38 = dma.hbm_to_vmem [thread:$0]  %s1, 1024, %s36, [#allocation10]
    $region5: #{mil_fc_reg_att.1} parent=1 // pred_fallthru
      _
    // Predicated region
    $region6: #{mil_fc_reg_att.1} parent=1 // pred_check
      _
    $region7: #{mil_fc_reg_att.1} parent=1 // pred_check_branch
      %40 = sbr.rel (0) target = $region9
    $region8: #{mil_fc_reg_att.1} parent=1 // pred_region
      %s42 = ssub.s32 32768, 32768
      %43 = vsyncadd [#allocation13], %s42
      %s44 = sshll.u32 [#allocation12], 4
      %s45 = int_to_ptr.vmem [resolvable:$true] %s44
      %50 = dma.hbm_to_vmem [thread:$0]  %s2, 32768, %s45, [#allocation13], 256, 256, 16
    $region9: #{mil_fc_reg_att.1} parent=1 // pred_fallthru
      _
    // Predicated region
    $region10: #{mil_fc_reg_att.1} parent=1 // pred_check
      _
    $region11: #{mil_fc_reg_att.1} parent=1 // pred_check_branch
      %52 = sbr.rel (0) target = $region13
    $region12: #{mil_fc_reg_att.1} parent=1 // pred_region
      _
    $region13: #{mil_fc_reg_att.1} parent=1 // pred_fallthru
      _
    // Predicated region
    $region14: #{mil_fc_reg_att.1} parent=1 // pred_check
      _
    $region15: #{mil_fc_reg_att.1} parent=1 // pred_check_branch
      %54 = sbr.rel (0) target = $region17
    $region16: #{mil_fc_reg_att.1} parent=1 // pred_region
      %s56 = ssub.s32 16384, 16384
      %57 = vsyncadd [#allocation13], %s56
      %s58 = sshll.u32 [#allocation14], 4
      %s59 = int_to_ptr.vmem [resolvable:$true] %s58
      %64 = dma.hbm_to_vmem [thread:$0]  %s4, 16384, %s59, [#allocation13], 256, 256, 16
    $region17: #{mil_fc_reg_att.1} parent=1 // pred_fallthru
      _
    // Predicated region
    $region18: #{mil_fc_reg_att.1} parent=1 // pred_check
      _
    $region19: #{mil_fc_reg_att.1} parent=1 // pred_check_branch
      %66 = sbr.rel (0) target = $region21
    $region20: #{mil_fc_reg_att.1} parent=1 // pred_region
      _
    $region21: #{mil_fc_reg_att.1} parent=1 // pred_fallthru
      _
    // Predicated region
    $region22: #{mil_fc_reg_att.1} parent=1 // pred_check
      _
    $region23: #{mil_fc_reg_att.1} parent=1 // pred_check_branch
      %68 = sbr.rel (0) target = $region25
    $region24: #{mil_fc_reg_att.1} parent=1 // pred_region
      _
    $region25: #{mil_fc_reg_att.1} parent=1 // pred_fallthru
      _
    // Predicated region
    $region26: #{mil_fc_reg_att.1} parent=1 // pred_check
      _
    $region27: #{mil_fc_reg_att.1} parent=1 // pred_check_branch
      %70 = sbr.rel (0) target = $region29
    $region28: #{mil_fc_reg_att.1} parent=1 // pred_region
      _
    $region29: #{mil_fc_reg_att.1} parent=1 // pred_fallthru
      _
    // Predicated region
    $region30: #{mil_fc_reg_att.1} parent=1 // pred_check
      _
    $region31: #{mil_fc_reg_att.1} parent=1 // pred_check_branch
      %72 = sbr.rel (0) target = $region33
    $region32: #{mil_fc_reg_att.1} parent=1 // pred_region
      %s74 = ssub.s32 64, 64
      %75 = vsyncadd [#allocation16], %s74
      %s77 = sshll.u32 [#allocation15], 4
      %s78 = int_to_ptr.vmem [resolvable:$true] %s77
      %80 = dma.hbm_to_vmem [thread:$0]  %s8, 64, %s78, [#allocation16]
    $region33: #{mil_fc_reg_att.1} parent=1 // pred_fallthru
      _
    // Predicated region
    $region34: #{mil_fc_reg_att.1} parent=1 // pred_check
      _
    $region35: #{mil_fc_reg_att.1} parent=1 // pred_check_branch
      %82 = sbr.rel (0) target = $region37
    $region36: #{mil_fc_reg_att.1} parent=1 // pred_region
      _
    $region37: #{mil_fc_reg_att.1} parent=1 // pred_fallthru
      _
    // Predicated region
    $region38: #{mil_fc_reg_att.1} parent=1 // pred_check
      _
    $region39: #{mil_fc_reg_att.1} parent=1 // pred_check_branch
      %84 = sbr.rel (0) target = $region41
    $region40: #{mil_fc_reg_att.1} parent=1 // pred_region
      %85 = dma.done [#allocation10], 1024
    $region41: #{mil_fc_reg_att.1} parent=1 // pred_fallthru
      _
    // Predicated region
    $region42: #{mil_fc_reg_att.1} parent=1 // pred_check
      _
    $region43: #{mil_fc_reg_att.1} parent=1 // pred_check_branch
      %87 = sbr.rel (0) target = $region45
    $region44: #{mil_fc_reg_att.1} parent=1 // pred_region
      %88 = dma.done [#allocation13], 32768
    $region45: #{mil_fc_reg_att.1} parent=1 // pred_fallthru
      _
    // Predicated region
    $region46: #{mil_fc_reg_att.1} parent=1 // pred_check
      _
    $region47: #{mil_fc_reg_att.1} parent=1 // pred_check_branch
      %90 = sbr.rel (0) target = $region49
    $region48: #{mil_fc_reg_att.1} parent=1 // pred_region
      %91 = dma.done [#allocation13], 16384
    $region49: #{mil_fc_reg_att.1} parent=1 // pred_fallthru
      _
    // Predicated region
    $region50: #{mil_fc_reg_att.1} parent=1 // pred_check
      _
    $region51: #{mil_fc_reg_att.1} parent=1 // pred_check_branch
      %93 = sbr.rel (0) target = $region53
    $region52: #{mil_fc_reg_att.1} parent=1 // pred_region
      %94 = dma.done [#allocation16], 64
    $region53: #{mil_fc_reg_att.1} parent=1 // pred_fallthru
      _
    %p95 = scmp.eq.s32.totalorder 0, 0
    // Predicated region
    $region54: #{mil_fc_reg_att.1} parent=1 // pred_check
      %p96 = pneg %p95
    $region55: #{mil_fc_reg_att.1} parent=1 // pred_check_branch
      %98 = sbr.rel (%p96) target = $region57
    $region56: #{mil_fc_reg_att.1} parent=1 // pred_region
      %vm99 = vcmask 0
      %100 = vst.msk [vmem:[#allocation2] sm:$0x1] %vm99, -inf
      %101 = vst.msk [vmem:[#allocation3] sm:$0x1] %vm99, 0.0
      %v102 = vlaneseq
      %vm103 = vcmp.ge.s32.totalorder %v102, 0
      %vm104 = vcmp.lt.s32.totalorder %v102, 512
      %vm105 = vmand %vm103, %vm104
      %106 = vst.msk [vmem:[#allocation4] sm:$0xf] %vm105, 0.0
    $region57: #{mil_fc_reg_att.1} parent=1 // pred_fallthru
      _
    %v107 = vld [vmem:[#allocation9] sm:$0xff]
    %v108 = vld [vmem:[#allocation9 + $0x8] sm:$0xff]
    %v109 = vld [vmem:[#allocation9 + $0x10] sm:$0xff]
    %v110 = vld [vmem:[#allocation9 + $0x18] sm:$0xff]
    %v111 = vld [vmem:[#allocation9 + $0x20] sm:$0xff]
    %v112 = vld [vmem:[#allocation9 + $0x28] sm:$0xff]
    %v113 = vld [vmem:[#allocation9 + $0x30] sm:$0xff]
    %v114 = vld [vmem:[#allocation9 + $0x38] sm:$0xff]
    %v115 = vpack.c.bf16 %v107, %v107
    %v116 = vpack.c.bf16 %v108, %v108
    %v117 = vpack.c.bf16 %v109, %v109
    %v118 = vpack.c.bf16 %v110, %v110
    %v119 = vpack.c.bf16 %v111, %v111
    %v120 = vpack.c.bf16 %v112, %v112
    %v121 = vpack.c.bf16 %v113, %v113
    %v122 = vpack.c.bf16 %v114, %v114
    %v123 = vld [vmem:[#allocation12] sm:$0xff]
    %v124 = vld [vmem:[#allocation12 + $0x8] sm:$0xff]
    %v125 = vld [vmem:[#allocation12 + $0x10] sm:$0xff]
    %v126 = vld [vmem:[#allocation12 + $0x18] sm:$0xff]
    %v127 = vld [vmem:[#allocation12 + $0x20] sm:$0xff]
    %v128 = vld [vmem:[#allocation12 + $0x28] sm:$0xff]
    %v129 = vld [vmem:[#allocation12 + $0x30] sm:$0xff]
    %v130 = vld [vmem:[#allocation12 + $0x38] sm:$0xff]
    %v131 = vld [vmem:[#allocation12 + $0x40] sm:$0xff]
    %v132 = vld [vmem:[#allocation12 + $0x48] sm:$0xff]
    %v133 = vld [vmem:[#allocation12 + $0x50] sm:$0xff]
    %v134 = vld [vmem:[#allocation12 + $0x58] sm:$0xff]
    %v135 = vld [vmem:[#allocation12 + $0x60] sm:$0xff]
    %v136 = vld [vmem:[#allocation12 + $0x68] sm:$0xff]
    %v137 = vld [vmem:[#allocation12 + $0x70] sm:$0xff]
    %v138 = vld [vmem:[#allocation12 + $0x78] sm:$0xff]
    %v139 = vld [vmem:[#allocation12 + $0x80] sm:$0xff]
    %v140 = vld [vmem:[#allocation12 + $0x88] sm:$0xff]
    %v141 = vld [vmem:[#allocation12 + $0x90] sm:$0xff]
    %v142 = vld [vmem:[#allocation12 + $0x98] sm:$0xff]
    %v143 = vld [vmem:[#allocation12 + $0xa0] sm:$0xff]
    %v144 = vld [vmem:[#allocation12 + $0xa8] sm:$0xff]
    %v145 = vld [vmem:[#allocation12 + $0xb0] sm:$0xff]
    %v146 = vld [vmem:[#allocation12 + $0xb8] sm:$0xff]
    %v147 = vld [vmem:[#allocation12 + $0xc0] sm:$0xff]
    %v148 = vld [vmem:[#allocation12 + $0xc8] sm:$0xff]
    %v149 = vld [vmem:[#allocation12 + $0xd0] sm:$0xff]
    %v150 = vld [vmem:[#allocation12 + $0xd8] sm:$0xff]
    %v151 = vld [vmem:[#allocation12 + $0xe0] sm:$0xff]
    %v152 = vld [vmem:[#allocation12 + $0xe8] sm:$0xff]
    %v153 = vld [vmem:[#allocation12 + $0xf0] sm:$0xff]
    %v154 = vld [vmem:[#allocation12 + $0xf8] sm:$0xff]
    %v155 = vld [vmem:[#allocation12 + $0x100] sm:$0xff]
    %v156 = vld [vmem:[#allocation12 + $0x108] sm:$0xff]
    %v157 = vld [vmem:[#allocation12 + $0x110] sm:$0xff]
    %v158 = vld [vmem:[#allocation12 + $0x118] sm:$0xff]
    %v159 = vld [vmem:[#allocation12 + $0x120] sm:$0xff]
    %v160 = vld [vmem:[#allocation12 + $0x128] sm:$0xff]
    %v161 = vld [vmem:[#allocation12 + $0x130] sm:$0xff]
    %v162 = vld [vmem:[#allocation12 + $0x138] sm:$0xff]
    %v163 = vld [vmem:[#allocation12 + $0x140] sm:$0xff]
    %v164 = vld [vmem:[#allocation12 + $0x148] sm:$0xff]
    %v165 = vld [vmem:[#allocation12 + $0x150] sm:$0xff]
    %v166 = vld [vmem:[#allocation12 + $0x158] sm:$0xff]
    %v167 = vld [vmem:[#allocation12 + $0x160] sm:$0xff]
    %v168 = vld [vmem:[#allocation12 + $0x168] sm:$0xff]
    %v169 = vld [vmem:[#allocation12 + $0x170] sm:$0xff]
    %v170 = vld [vmem:[#allocation12 + $0x178] sm:$0xff]
    %v171 = vld [vmem:[#allocation12 + $0x180] sm:$0xff]
    %v172 = vld [vmem:[#allocation12 + $0x188] sm:$0xff]
    %v173 = vld [vmem:[#allocation12 + $0x190] sm:$0xff]
    %v174 = vld [vmem:[#allocation12 + $0x198] sm:$0xff]
    %v175 = vld [vmem:[#allocation12 + $0x1a0] sm:$0xff]
    %v176 = vld [vmem:[#allocation12 + $0x1a8] sm:$0xff]
    %v177 = vld [vmem:[#allocation12 + $0x1b0] sm:$0xff]
    %v178 = vld [vmem:[#allocation12 + $0x1b8] sm:$0xff]
    %v179 = vld [vmem:[#allocation12 + $0x1c0] sm:$0xff]
    %v180 = vld [vmem:[#allocation12 + $0x1c8] sm:$0xff]
    %v181 = vld [vmem:[#allocation12 + $0x1d0] sm:$0xff]
    %v182 = vld [vmem:[#allocation12 + $0x1d8] sm:$0xff]
    %v183 = vld [vmem:[#allocation12 + $0x1e0] sm:$0xff]
    %v184 = vld [vmem:[#allocation12 + $0x1e8] sm:$0xff]
    %v185 = vld [vmem:[#allocation12 + $0x1f0] sm:$0xff]
    %v186 = vld [vmem:[#allocation12 + $0x1f8] sm:$0xff]
    %v187 = vld [vmem:[#allocation12 + $0x200] sm:$0xff]
    %v188 = vld [vmem:[#allocation12 + $0x208] sm:$0xff]
    %v189 = vld [vmem:[#allocation12 + $0x210] sm:$0xff]
    %v190 = vld [vmem:[#allocation12 + $0x218] sm:$0xff]
    %v191 = vld [vmem:[#allocation12 + $0x220] sm:$0xff]
    %v192 = vld [vmem:[#allocation12 + $0x228] sm:$0xff]
    %v193 = vld [vmem:[#allocation12 + $0x230] sm:$0xff]
    %v194 = vld [vmem:[#allocation12 + $0x238] sm:$0xff]
    %v195 = vld [vmem:[#allocation12 + $0x240] sm:$0xff]
    %v196 = vld [vmem:[#allocation12 + $0x248] sm:$0xff]
    %v197 = vld [vmem:[#allocation12 + $0x250] sm:$0xff]
    %v198 = vld [vmem:[#allocation12 + $0x258] sm:$0xff]
    %v199 = vld [vmem:[#allocation12 + $0x260] sm:$0xff]
    %v200 = vld [vmem:[#allocation12 + $0x268] sm:$0xff]
    %v201 = vld [vmem:[#allocation12 + $0x270] sm:$0xff]
    %v202 = vld [vmem:[#allocation12 + $0x278] sm:$0xff]
    %v203 = vld [vmem:[#allocation12 + $0x280] sm:$0xff]
    %v204 = vld [vmem:[#allocation12 + $0x288] sm:$0xff]
    %v205 = vld [vmem:[#allocation12 + $0x290] sm:$0xff]
    %v206 = vld [vmem:[#allocation12 + $0x298] sm:$0xff]
    %v207 = vld [vmem:[#allocation12 + $0x2a0] sm:$0xff]
    %v208 = vld [vmem:[#allocation12 + $0x2a8] sm:$0xff]
    %v209 = vld [vmem:[#allocation12 + $0x2b0] sm:$0xff]
    %v210 = vld [vmem:[#allocation12 + $0x2b8] sm:$0xff]
    %v211 = vld [vmem:[#allocation12 + $0x2c0] sm:$0xff]
    %v212 = vld [vmem:[#allocation12 + $0x2c8] sm:$0xff]
    %v213 = vld [vmem:[#allocation12 + $0x2d0] sm:$0xff]
    %v214 = vld [vmem:[#allocation12 + $0x2d8] sm:$0xff]
    %v215 = vld [vmem:[#allocation12 + $0x2e0] sm:$0xff]
    %v216 = vld [vmem:[#allocation12 + $0x2e8] sm:$0xff]
    %v217 = vld [vmem:[#allocation12 + $0x2f0] sm:$0xff]
    %v218 = vld [vmem:[#allocation12 + $0x2f8] sm:$0xff]
    %v219 = vld [vmem:[#allocation12 + $0x300] sm:$0xff]
    %v220 = vld [vmem:[#allocation12 + $0x308] sm:$0xff]
    %v221 = vld [vmem:[#allocation12 + $0x310] sm:$0xff]
    %v222 = vld [vmem:[#allocation12 + $0x318] sm:$0xff]
    %v223 = vld [vmem:[#allocation12 + $0x320] sm:$0xff]
    %v224 = vld [vmem:[#allocation12 + $0x328] sm:$0xff]
    %v225 = vld [vmem:[#allocation12 + $0x330] sm:$0xff]
    %v226 = vld [vmem:[#allocation12 + $0x338] sm:$0xff]
    %v227 = vld [vmem:[#allocation12 + $0x340] sm:$0xff]
    %v228 = vld [vmem:[#allocation12 + $0x348] sm:$0xff]
    %v229 = vld [vmem:[#allocation12 + $0x350] sm:$0xff]
    %v230 = vld [vmem:[#allocation12 + $0x358] sm:$0xff]
    %v231 = vld [vmem:[#allocation12 + $0x360] sm:$0xff]
    %v232 = vld [vmem:[#allocation12 + $0x368] sm:$0xff]
    %v233 = vld [vmem:[#allocation12 + $0x370] sm:$0xff]
    %v234 = vld [vmem:[#allocation12 + $0x378] sm:$0xff]
    %v235 = vld [vmem:[#allocation12 + $0x380] sm:$0xff]
    %v236 = vld [vmem:[#allocation12 + $0x388] sm:$0xff]
    %v237 = vld [vmem:[#allocation12 + $0x390] sm:$0xff]
    %v238 = vld [vmem:[#allocation12 + $0x398] sm:$0xff]
    %v239 = vld [vmem:[#allocation12 + $0x3a0] sm:$0xff]
    %v240 = vld [vmem:[#allocation12 + $0x3a8] sm:$0xff]
    %v241 = vld [vmem:[#allocation12 + $0x3b0] sm:$0xff]
    %v242 = vld [vmem:[#allocation12 + $0x3b8] sm:$0xff]
    %v243 = vld [vmem:[#allocation12 + $0x3c0] sm:$0xff]
    %v244 = vld [vmem:[#allocation12 + $0x3c8] sm:$0xff]
    %v245 = vld [vmem:[#allocation12 + $0x3d0] sm:$0xff]
    %v246 = vld [vmem:[#allocation12 + $0x3d8] sm:$0xff]
    %v247 = vld [vmem:[#allocation12 + $0x3e0] sm:$0xff]
    %v248 = vld [vmem:[#allocation12 + $0x3e8] sm:$0xff]
    %v249 = vld [vmem:[#allocation12 + $0x3f0] sm:$0xff]
    %v250 = vld [vmem:[#allocation12 + $0x3f8] sm:$0xff]
    %v251 = vld [vmem:[#allocation12 + $0x400] sm:$0xff]
    %v252 = vld [vmem:[#allocation12 + $0x408] sm:$0xff]
    %v253 = vld [vmem:[#allocation12 + $0x410] sm:$0xff]
    %v254 = vld [vmem:[#allocation12 + $0x418] sm:$0xff]
    %v255 = vld [vmem:[#allocation12 + $0x420] sm:$0xff]
    %v256 = vld [vmem:[#allocation12 + $0x428] sm:$0xff]
    %v257 = vld [vmem:[#allocation12 + $0x430] sm:$0xff]
    %v258 = vld [vmem:[#allocation12 + $0x438] sm:$0xff]
    %v259 = vld [vmem:[#allocation12 + $0x440] sm:$0xff]
    %v260 = vld [vmem:[#allocation12 + $0x448] sm:$0xff]
    %v261 = vld [vmem:[#allocation12 + $0x450] sm:$0xff]
    %v262 = vld [vmem:[#allocation12 + $0x458] sm:$0xff]
    %v263 = vld [vmem:[#allocation12 + $0x460] sm:$0xff]
    %v264 = vld [vmem:[#allocation12 + $0x468] sm:$0xff]
    %v265 = vld [vmem:[#allocation12 + $0x470] sm:$0xff]
    %v266 = vld [vmem:[#allocation12 + $0x478] sm:$0xff]
    %v267 = vld [vmem:[#allocation12 + $0x480] sm:$0xff]
    %v268 = vld [vmem:[#allocation12 + $0x488] sm:$0xff]
    %v269 = vld [vmem:[#allocation12 + $0x490] sm:$0xff]
    %v270 = vld [vmem:[#allocation12 + $0x498] sm:$0xff]
    %v271 = vld [vmem:[#allocation12 + $0x4a0] sm:$0xff]
    %v272 = vld [vmem:[#allocation12 + $0x4a8] sm:$0xff]
    %v273 = vld [vmem:[#allocation12 + $0x4b0] sm:$0xff]
    %v274 = vld [vmem:[#allocation12 + $0x4b8] sm:$0xff]
    %v275 = vld [vmem:[#allocation12 + $0x4c0] sm:$0xff]
    %v276 = vld [vmem:[#allocation12 + $0x4c8] sm:$0xff]
    %v277 = vld [vmem:[#allocation12 + $0x4d0] sm:$0xff]
    %v278 = vld [vmem:[#allocation12 + $0x4d8] sm:$0xff]
    %v279 = vld [vmem:[#allocation12 + $0x4e0] sm:$0xff]
    %v280 = vld [vmem:[#allocation12 + $0x4e8] sm:$0xff]
    %v281 = vld [vmem:[#allocation12 + $0x4f0] sm:$0xff]
    %v282 = vld [vmem:[#allocation12 + $0x4f8] sm:$0xff]
    %v283 = vld [vmem:[#allocation12 + $0x500] sm:$0xff]
    %v284 = vld [vmem:[#allocation12 + $0x508] sm:$0xff]
    %v285 = vld [vmem:[#allocation12 + $0x510] sm:$0xff]
    %v286 = vld [vmem:[#allocation12 + $0x518] sm:$0xff]
    %v287 = vld [vmem:[#allocation12 + $0x520] sm:$0xff]
    %v288 = vld [vmem:[#allocation12 + $0x528] sm:$0xff]
    %v289 = vld [vmem:[#allocation12 + $0x530] sm:$0xff]
    %v290 = vld [vmem:[#allocation12 + $0x538] sm:$0xff]
    %v291 = vld [vmem:[#allocation12 + $0x540] sm:$0xff]
    %v292 = vld [vmem:[#allocation12 + $0x548] sm:$0xff]
    %v293 = vld [vmem:[#allocation12 + $0x550] sm:$0xff]
    %v294 = vld [vmem:[#allocation12 + $0x558] sm:$0xff]
    %v295 = vld [vmem:[#allocation12 + $0x560] sm:$0xff]
    %v296 = vld [vmem:[#allocation12 + $0x568] sm:$0xff]
    %v297 = vld [vmem:[#allocation12 + $0x570] sm:$0xff]
    %v298 = vld [vmem:[#allocation12 + $0x578] sm:$0xff]
    %v299 = vld [vmem:[#allocation12 + $0x580] sm:$0xff]
    %v300 = vld [vmem:[#allocation12 + $0x588] sm:$0xff]
    %v301 = vld [vmem:[#allocation12 + $0x590] sm:$0xff]
    %v302 = vld [vmem:[#allocation12 + $0x598] sm:$0xff]
    %v303 = vld [vmem:[#allocation12 + $0x5a0] sm:$0xff]
    %v304 = vld [vmem:[#allocation12 + $0x5a8] sm:$0xff]
    %v305 = vld [vmem:[#allocation12 + $0x5b0] sm:$0xff]
    %v306 = vld [vmem:[#allocation12 + $0x5b8] sm:$0xff]
    %v307 = vld [vmem:[#allocation12 + $0x5c0] sm:$0xff]
    %v308 = vld [vmem:[#allocation12 + $0x5c8] sm:$0xff]
    %v309 = vld [vmem:[#allocation12 + $0x5d0] sm:$0xff]
    %v310 = vld [vmem:[#allocation12 + $0x5d8] sm:$0xff]
    %v311 = vld [vmem:[#allocation12 + $0x5e0] sm:$0xff]
    %v312 = vld [vmem:[#allocation12 + $0x5e8] sm:$0xff]
    %v313 = vld [vmem:[#allocation12 + $0x5f0] sm:$0xff]
    %v314 = vld [vmem:[#allocation12 + $0x5f8] sm:$0xff]
    %v315 = vld [vmem:[#allocation12 + $0x600] sm:$0xff]
    %v316 = vld [vmem:[#allocation12 + $0x608] sm:$0xff]
    %v317 = vld [vmem:[#allocation12 + $0x610] sm:$0xff]
    %v318 = vld [vmem:[#allocation12 + $0x618] sm:$0xff]
    %v319 = vld [vmem:[#allocation12 + $0x620] sm:$0xff]
    %v320 = vld [vmem:[#allocation12 + $0x628] sm:$0xff]
    %v321 = vld [vmem:[#allocation12 + $0x630] sm:$0xff]
    %v322 = vld [vmem:[#allocation12 + $0x638] sm:$0xff]
    %v323 = vld [vmem:[#allocation12 + $0x640] sm:$0xff]
    %v324 = vld [vmem:[#allocation12 + $0x648] sm:$0xff]
    %v325 = vld [vmem:[#allocation12 + $0x650] sm:$0xff]
    %v326 = vld [vmem:[#allocation12 + $0x658] sm:$0xff]
    %v327 = vld [vmem:[#allocation12 + $0x660] sm:$0xff]
    %v328 = vld [vmem:[#allocation12 + $0x668] sm:$0xff]
    %v329 = vld [vmem:[#allocation12 + $0x670] sm:$0xff]
    %v330 = vld [vmem:[#allocation12 + $0x678] sm:$0xff]
    %v331 = vld [vmem:[#allocation12 + $0x680] sm:$0xff]
    %v332 = vld [vmem:[#allocation12 + $0x688] sm:$0xff]
    %v333 = vld [vmem:[#allocation12 + $0x690] sm:$0xff]
    %v334 = vld [vmem:[#allocation12 + $0x698] sm:$0xff]
    %v335 = vld [vmem:[#allocation12 + $0x6a0] sm:$0xff]
    %v336 = vld [vmem:[#allocation12 + $0x6a8] sm:$0xff]
    %v337 = vld [vmem:[#allocation12 + $0x6b0] sm:$0xff]
    %v338 = vld [vmem:[#allocation12 + $0x6b8] sm:$0xff]
    %v339 = vld [vmem:[#allocation12 + $0x6c0] sm:$0xff]
    %v340 = vld [vmem:[#allocation12 + $0x6c8] sm:$0xff]
    %v341 = vld [vmem:[#allocation12 + $0x6d0] sm:$0xff]
    %v342 = vld [vmem:[#allocation12 + $0x6d8] sm:$0xff]
    %v343 = vld [vmem:[#allocation12 + $0x6e0] sm:$0xff]
    %v344 = vld [vmem:[#allocation12 + $0x6e8] sm:$0xff]
    %v345 = vld [vmem:[#allocation12 + $0x6f0] sm:$0xff]
    %v346 = vld [vmem:[#allocation12 + $0x6f8] sm:$0xff]
    %v347 = vld [vmem:[#allocation12 + $0x700] sm:$0xff]
    %v348 = vld [vmem:[#allocation12 + $0x708] sm:$0xff]
    %v349 = vld [vmem:[#allocation12 + $0x710] sm:$0xff]
    %v350 = vld [vmem:[#allocation12 + $0x718] sm:$0xff]
    %v351 = vld [vmem:[#allocation12 + $0x720] sm:$0xff]
    %v352 = vld [vmem:[#allocation12 + $0x728] sm:$0xff]
    %v353 = vld [vmem:[#allocation12 + $0x730] sm:$0xff]
    %v354 = vld [vmem:[#allocation12 + $0x738] sm:$0xff]
    %v355 = vld [vmem:[#allocation12 + $0x740] sm:$0xff]
    %v356 = vld [vmem:[#allocation12 + $0x748] sm:$0xff]
    %v357 = vld [vmem:[#allocation12 + $0x750] sm:$0xff]
    %v358 = vld [vmem:[#allocation12 + $0x758] sm:$0xff]
    %v359 = vld [vmem:[#allocation12 + $0x760] sm:$0xff]
    %v360 = vld [vmem:[#allocation12 + $0x768] sm:$0xff]
    %v361 = vld [vmem:[#allocation12 + $0x770] sm:$0xff]
    %v362 = vld [vmem:[#allocation12 + $0x778] sm:$0xff]
    %v363 = vld [vmem:[#allocation12 + $0x780] sm:$0xff]
    %v364 = vld [vmem:[#allocation12 + $0x788] sm:$0xff]
    %v365 = vld [vmem:[#allocation12 + $0x790] sm:$0xff]
    %v366 = vld [vmem:[#allocation12 + $0x798] sm:$0xff]
    %v367 = vld [vmem:[#allocation12 + $0x7a0] sm:$0xff]
    %v368 = vld [vmem:[#allocation12 + $0x7a8] sm:$0xff]
    %v369 = vld [vmem:[#allocation12 + $0x7b0] sm:$0xff]
    %v370 = vld [vmem:[#allocation12 + $0x7b8] sm:$0xff]
    %v371 = vld [vmem:[#allocation12 + $0x7c0] sm:$0xff]
    %v372 = vld [vmem:[#allocation12 + $0x7c8] sm:$0xff]
    %v373 = vld [vmem:[#allocation12 + $0x7d0] sm:$0xff]
    %v374 = vld [vmem:[#allocation12 + $0x7d8] sm:$0xff]
    %v375 = vld [vmem:[#allocation12 + $0x7e0] sm:$0xff]
    %v376 = vld [vmem:[#allocation12 + $0x7e8] sm:$0xff]
    %v377 = vld [vmem:[#allocation12 + $0x7f0] sm:$0xff]
    %v378 = vld [vmem:[#allocation12 + $0x7f8] sm:$0xff]
    %v379 = vld [vmem:[%s3] sm:$0xf]
    %v381 = vlaneseq
    %v382 = vshrl.u32 %v381, 7
    %v383 = vsub.s32 0, %v382
    %v384 = vrot.slane %v379, %v383
    %v385 = vlaneseq
    %v386 = vshrl.u32 %v385, 7
    %v387 = vsub.s32 1, %v386
    %v388 = vrot.slane %v379, %v387
    %v389 = vlaneseq
    %v390 = vshrl.u32 %v389, 7
    %v391 = vsub.s32 2, %v390
    %v392 = vrot.slane %v379, %v391
    %v393 = vlaneseq
    %v394 = vshrl.u32 %v393, 7
    %v395 = vsub.s32 3, %v394
    %v396 = vrot.slane %v379, %v395
    %v657 = vunpack.c.l.b16 %v123
    %v658 = vunpack.c.h.b16 %v123
    %v659 = vunpack.c.l.b16 %v124
    %v660 = vunpack.c.h.b16 %v124
    %v661 = vunpack.c.l.b16 %v125
    %v662 = vunpack.c.h.b16 %v125
    %v663 = vunpack.c.l.b16 %v126
    %v664 = vunpack.c.h.b16 %v126
    %v665 = vunpack.c.l.b16 %v127
    %v666 = vunpack.c.h.b16 %v127
    %v667 = vunpack.c.l.b16 %v128
    %v668 = vunpack.c.h.b16 %v128
    %v669 = vunpack.c.l.b16 %v129
    %v670 = vunpack.c.h.b16 %v129
    %v671 = vunpack.c.l.b16 %v130
    %v672 = vunpack.c.h.b16 %v130
    %v673 = vunpack.c.l.b16 %v131
    %v674 = vunpack.c.h.b16 %v131
    %v675 = vunpack.c.l.b16 %v132
    %v676 = vunpack.c.h.b16 %v132
    %v677 = vunpack.c.l.b16 %v133
    %v678 = vunpack.c.h.b16 %v133
    %v679 = vunpack.c.l.b16 %v134
    %v680 = vunpack.c.h.b16 %v134
    %v681 = vunpack.c.l.b16 %v135
    %v682 = vunpack.c.h.b16 %v135
    %v683 = vunpack.c.l.b16 %v136
    %v684 = vunpack.c.h.b16 %v136
    %v685 = vunpack.c.l.b16 %v137
    %v686 = vunpack.c.h.b16 %v137
    %v687 = vunpack.c.l.b16 %v138
    %v688 = vunpack.c.h.b16 %v138
    %v689 = vunpack.c.l.b16 %v139
    %v690 = vunpack.c.h.b16 %v139
    %v691 = vunpack.c.l.b16 %v140
    %v692 = vunpack.c.h.b16 %v140
    %v693 = vunpack.c.l.b16 %v141
    %v694 = vunpack.c.h.b16 %v141
    %v695 = vunpack.c.l.b16 %v142
    %v696 = vunpack.c.h.b16 %v142
    %v697 = vunpack.c.l.b16 %v143
    %v698 = vunpack.c.h.b16 %v143
    %v699 = vunpack.c.l.b16 %v144
    %v700 = vunpack.c.h.b16 %v144
    %v701 = vunpack.c.l.b16 %v145
    %v702 = vunpack.c.h.b16 %v145
    %v703 = vunpack.c.l.b16 %v146
    %v704 = vunpack.c.h.b16 %v146
    %v705 = vunpack.c.l.b16 %v147
    %v706 = vunpack.c.h.b16 %v147
    %v707 = vunpack.c.l.b16 %v148
    %v708 = vunpack.c.h.b16 %v148
    %v709 = vunpack.c.l.b16 %v149
    %v710 = vunpack.c.h.b16 %v149
    %v711 = vunpack.c.l.b16 %v150
    %v712 = vunpack.c.h.b16 %v150
    %v713 = vunpack.c.l.b16 %v151
    %v714 = vunpack.c.h.b16 %v151
    %v715 = vunpack.c.l.b16 %v152
    %v716 = vunpack.c.h.b16 %v152
    %v717 = vunpack.c.l.b16 %v153
    %v718 = vunpack.c.h.b16 %v153
    %v719 = vunpack.c.l.b16 %v154
    %v720 = vunpack.c.h.b16 %v154
    %v721 = vunpack.c.l.b16 %v155
    %v722 = vunpack.c.h.b16 %v155
    %v723 = vunpack.c.l.b16 %v156
    %v724 = vunpack.c.h.b16 %v156
    %v725 = vunpack.c.l.b16 %v157
    %v726 = vunpack.c.h.b16 %v157
    %v727 = vunpack.c.l.b16 %v158
    %v728 = vunpack.c.h.b16 %v158
    %v729 = vunpack.c.l.b16 %v159
    %v730 = vunpack.c.h.b16 %v159
    %v731 = vunpack.c.l.b16 %v160
    %v732 = vunpack.c.h.b16 %v160
    %v733 = vunpack.c.l.b16 %v161
    %v734 = vunpack.c.h.b16 %v161
    %v735 = vunpack.c.l.b16 %v162
    %v736 = vunpack.c.h.b16 %v162
    %v737 = vunpack.c.l.b16 %v163
    %v738 = vunpack.c.h.b16 %v163
    %v739 = vunpack.c.l.b16 %v164
    %v740 = vunpack.c.h.b16 %v164
    %v741 = vunpack.c.l.b16 %v165
    %v742 = vunpack.c.h.b16 %v165
    %v743 = vunpack.c.l.b16 %v166
    %v744 = vunpack.c.h.b16 %v166
    %v745 = vunpack.c.l.b16 %v167
    %v746 = vunpack.c.h.b16 %v167
    %v747 = vunpack.c.l.b16 %v168
    %v748 = vunpack.c.h.b16 %v168
    %v749 = vunpack.c.l.b16 %v169
    %v750 = vunpack.c.h.b16 %v169
    %v751 = vunpack.c.l.b16 %v170
    %v752 = vunpack.c.h.b16 %v170
    %v753 = vunpack.c.l.b16 %v171
    %v754 = vunpack.c.h.b16 %v171
    %v755 = vunpack.c.l.b16 %v172
    %v756 = vunpack.c.h.b16 %v172
    %v757 = vunpack.c.l.b16 %v173
    %v758 = vunpack.c.h.b16 %v173
    %v759 = vunpack.c.l.b16 %v174
    %v760 = vunpack.c.h.b16 %v174
    %v761 = vunpack.c.l.b16 %v175
    %v762 = vunpack.c.h.b16 %v175
    %v763 = vunpack.c.l.b16 %v176
    %v764 = vunpack.c.h.b16 %v176
    %v765 = vunpack.c.l.b16 %v177
    %v766 = vunpack.c.h.b16 %v177
    %v767 = vunpack.c.l.b16 %v178
    %v768 = vunpack.c.h.b16 %v178
    %v769 = vunpack.c.l.b16 %v179
    %v770 = vunpack.c.h.b16 %v179
    %v771 = vunpack.c.l.b16 %v180
    %v772 = vunpack.c.h.b16 %v180
    %v773 = vunpack.c.l.b16 %v181
    %v774 = vunpack.c.h.b16 %v181
    %v775 = vunpack.c.l.b16 %v182
    %v776 = vunpack.c.h.b16 %v182
    %v777 = vunpack.c.l.b16 %v183
    %v778 = vunpack.c.h.b16 %v183
    %v779 = vunpack.c.l.b16 %v184
    %v780 = vunpack.c.h.b16 %v184
    %v781 = vunpack.c.l.b16 %v185
    %v782 = vunpack.c.h.b16 %v185
    %v783 = vunpack.c.l.b16 %v186
    %v784 = vunpack.c.h.b16 %v186
    %v785 = vunpack.c.l.b16 %v187
    %v786 = vunpack.c.h.b16 %v187
    %v787 = vunpack.c.l.b16 %v188
    %v788 = vunpack.c.h.b16 %v188
    %v789 = vunpack.c.l.b16 %v189
    %v790 = vunpack.c.h.b16 %v189
    %v791 = vunpack.c.l.b16 %v190
    %v792 = vunpack.c.h.b16 %v190
    %v793 = vunpack.c.l.b16 %v191
    %v794 = vunpack.c.h.b16 %v191
    %v795 = vunpack.c.l.b16 %v192
    %v796 = vunpack.c.h.b16 %v192
    %v797 = vunpack.c.l.b16 %v193
    %v798 = vunpack.c.h.b16 %v193
    %v799 = vunpack.c.l.b16 %v194
    %v800 = vunpack.c.h.b16 %v194
    %v801 = vunpack.c.l.b16 %v195
    %v802 = vunpack.c.h.b16 %v195
    %v803 = vunpack.c.l.b16 %v196
    %v804 = vunpack.c.h.b16 %v196
    %v805 = vunpack.c.l.b16 %v197
    %v806 = vunpack.c.h.b16 %v197
    %v807 = vunpack.c.l.b16 %v198
    %v808 = vunpack.c.h.b16 %v198
    %v809 = vunpack.c.l.b16 %v199
    %v810 = vunpack.c.h.b16 %v199
    %v811 = vunpack.c.l.b16 %v200
    %v812 = vunpack.c.h.b16 %v200
    %v813 = vunpack.c.l.b16 %v201
    %v814 = vunpack.c.h.b16 %v201
    %v815 = vunpack.c.l.b16 %v202
    %v816 = vunpack.c.h.b16 %v202
    %v817 = vunpack.c.l.b16 %v203
    %v818 = vunpack.c.h.b16 %v203
    %v819 = vunpack.c.l.b16 %v204
    %v820 = vunpack.c.h.b16 %v204
    %v821 = vunpack.c.l.b16 %v205
    %v822 = vunpack.c.h.b16 %v205
    %v823 = vunpack.c.l.b16 %v206
    %v824 = vunpack.c.h.b16 %v206
    %v825 = vunpack.c.l.b16 %v207
    %v826 = vunpack.c.h.b16 %v207
    %v827 = vunpack.c.l.b16 %v208
    %v828 = vunpack.c.h.b16 %v208
    %v829 = vunpack.c.l.b16 %v209
    %v830 = vunpack.c.h.b16 %v209
    %v831 = vunpack.c.l.b16 %v210
    %v832 = vunpack.c.h.b16 %v210
    %v833 = vunpack.c.l.b16 %v211
    %v834 = vunpack.c.h.b16 %v211
    %v835 = vunpack.c.l.b16 %v212
    %v836 = vunpack.c.h.b16 %v212
    %v837 = vunpack.c.l.b16 %v213
    %v838 = vunpack.c.h.b16 %v213
    %v839 = vunpack.c.l.b16 %v214
    %v840 = vunpack.c.h.b16 %v214
    %v841 = vunpack.c.l.b16 %v215
    %v842 = vunpack.c.h.b16 %v215
    %v843 = vunpack.c.l.b16 %v216
    %v844 = vunpack.c.h.b16 %v216
    %v845 = vunpack.c.l.b16 %v217
    %v846 = vunpack.c.h.b16 %v217
    %v847 = vunpack.c.l.b16 %v218
    %v848 = vunpack.c.h.b16 %v218
    %v849 = vunpack.c.l.b16 %v219
    %v850 = vunpack.c.h.b16 %v219
    %v851 = vunpack.c.l.b16 %v220
    %v852 = vunpack.c.h.b16 %v220
    %v853 = vunpack.c.l.b16 %v221
    %v854 = vunpack.c.h.b16 %v221
    %v855 = vunpack.c.l.b16 %v222
    %v856 = vunpack.c.h.b16 %v222
    %v857 = vunpack.c.l.b16 %v223
    %v858 = vunpack.c.h.b16 %v223
    %v859 = vunpack.c.l.b16 %v224
    %v860 = vunpack.c.h.b16 %v224
    %v861 = vunpack.c.l.b16 %v225
    %v862 = vunpack.c.h.b16 %v225
    %v863 = vunpack.c.l.b16 %v226
    %v864 = vunpack.c.h.b16 %v226
    %v865 = vunpack.c.l.b16 %v227
    %v866 = vunpack.c.h.b16 %v227
    %v867 = vunpack.c.l.b16 %v228
    %v868 = vunpack.c.h.b16 %v228
    %v869 = vunpack.c.l.b16 %v229
    %v870 = vunpack.c.h.b16 %v229
    %v871 = vunpack.c.l.b16 %v230
    %v872 = vunpack.c.h.b16 %v230
    %v873 = vunpack.c.l.b16 %v231
    %v874 = vunpack.c.h.b16 %v231
    %v875 = vunpack.c.l.b16 %v232
    %v876 = vunpack.c.h.b16 %v232
    %v877 = vunpack.c.l.b16 %v233
    %v878 = vunpack.c.h.b16 %v233
    %v879 = vunpack.c.l.b16 %v234
    %v880 = vunpack.c.h.b16 %v234
    %v881 = vunpack.c.l.b16 %v235
    %v882 = vunpack.c.h.b16 %v235
    %v883 = vunpack.c.l.b16 %v236
    %v884 = vunpack.c.h.b16 %v236
    %v885 = vunpack.c.l.b16 %v237
    %v886 = vunpack.c.h.b16 %v237
    %v887 = vunpack.c.l.b16 %v238
    %v888 = vunpack.c.h.b16 %v238
    %v889 = vunpack.c.l.b16 %v239
    %v890 = vunpack.c.h.b16 %v239
    %v891 = vunpack.c.l.b16 %v240
    %v892 = vunpack.c.h.b16 %v240
    %v893 = vunpack.c.l.b16 %v241
    %v894 = vunpack.c.h.b16 %v241
    %v895 = vunpack.c.l.b16 %v242
    %v896 = vunpack.c.h.b16 %v242
    %v897 = vunpack.c.l.b16 %v243
    %v898 = vunpack.c.h.b16 %v243
    %v899 = vunpack.c.l.b16 %v244
    %v900 = vunpack.c.h.b16 %v244
    %v901 = vunpack.c.l.b16 %v245
    %v902 = vunpack.c.h.b16 %v245
    %v903 = vunpack.c.l.b16 %v246
    %v904 = vunpack.c.h.b16 %v246
    %v905 = vunpack.c.l.b16 %v247
    %v906 = vunpack.c.h.b16 %v247
    %v907 = vunpack.c.l.b16 %v248
    %v908 = vunpack.c.h.b16 %v248
    %v909 = vunpack.c.l.b16 %v249
    %v910 = vunpack.c.h.b16 %v249
    %v911 = vunpack.c.l.b16 %v250
    %v912 = vunpack.c.h.b16 %v250
    %v913 = vunpack.c.l.b16 %v251
    %v914 = vunpack.c.h.b16 %v251
    %v915 = vunpack.c.l.b16 %v252
    %v916 = vunpack.c.h.b16 %v252
    %v917 = vunpack.c.l.b16 %v253
    %v918 = vunpack.c.h.b16 %v253
    %v919 = vunpack.c.l.b16 %v254
    %v920 = vunpack.c.h.b16 %v254
    %v921 = vunpack.c.l.b16 %v255
    %v922 = vunpack.c.h.b16 %v255
    %v923 = vunpack.c.l.b16 %v256
    %v924 = vunpack.c.h.b16 %v256
    %v925 = vunpack.c.l.b16 %v257
    %v926 = vunpack.c.h.b16 %v257
    %v927 = vunpack.c.l.b16 %v258
    %v928 = vunpack.c.h.b16 %v258
    %v929 = vunpack.c.l.b16 %v259
    %v930 = vunpack.c.h.b16 %v259
    %v931 = vunpack.c.l.b16 %v260
    %v932 = vunpack.c.h.b16 %v260
    %v933 = vunpack.c.l.b16 %v261
    %v934 = vunpack.c.h.b16 %v261
    %v935 = vunpack.c.l.b16 %v262
    %v936 = vunpack.c.h.b16 %v262
    %v937 = vunpack.c.l.b16 %v263
    %v938 = vunpack.c.h.b16 %v263
    %v939 = vunpack.c.l.b16 %v264
    %v940 = vunpack.c.h.b16 %v264
    %v941 = vunpack.c.l.b16 %v265
    %v942 = vunpack.c.h.b16 %v265
    %v943 = vunpack.c.l.b16 %v266
    %v944 = vunpack.c.h.b16 %v266
    %v945 = vunpack.c.l.b16 %v267
    %v946 = vunpack.c.h.b16 %v267
    %v947 = vunpack.c.l.b16 %v268
    %v948 = vunpack.c.h.b16 %v268
    %v949 = vunpack.c.l.b16 %v269
    %v950 = vunpack.c.h.b16 %v269
    %v951 = vunpack.c.l.b16 %v270
    %v952 = vunpack.c.h.b16 %v270
    %v953 = vunpack.c.l.b16 %v271
    %v954 = vunpack.c.h.b16 %v271
    %v955 = vunpack.c.l.b16 %v272
    %v956 = vunpack.c.h.b16 %v272
    %v957 = vunpack.c.l.b16 %v273
    %v958 = vunpack.c.h.b16 %v273
    %v959 = vunpack.c.l.b16 %v274
    %v960 = vunpack.c.h.b16 %v274
    %v961 = vunpack.c.l.b16 %v275
    %v962 = vunpack.c.h.b16 %v275
    %v963 = vunpack.c.l.b16 %v276
    %v964 = vunpack.c.h.b16 %v276
    %v965 = vunpack.c.l.b16 %v277
    %v966 = vunpack.c.h.b16 %v277
    %v967 = vunpack.c.l.b16 %v278
    %v968 = vunpack.c.h.b16 %v278
    %v969 = vunpack.c.l.b16 %v279
    %v970 = vunpack.c.h.b16 %v279
    %v971 = vunpack.c.l.b16 %v280
    %v972 = vunpack.c.h.b16 %v280
    %v973 = vunpack.c.l.b16 %v281
    %v974 = vunpack.c.h.b16 %v281
    %v975 = vunpack.c.l.b16 %v282
    %v976 = vunpack.c.h.b16 %v282
    %v977 = vunpack.c.l.b16 %v283
    %v978 = vunpack.c.h.b16 %v283
    %v979 = vunpack.c.l.b16 %v284
    %v980 = vunpack.c.h.b16 %v284
    %v981 = vunpack.c.l.b16 %v285
    %v982 = vunpack.c.h.b16 %v285
    %v983 = vunpack.c.l.b16 %v286
    %v984 = vunpack.c.h.b16 %v286
    %v985 = vunpack.c.l.b16 %v287
    %v986 = vunpack.c.h.b16 %v287
    %v987 = vunpack.c.l.b16 %v288
    %v988 = vunpack.c.h.b16 %v288
    %v989 = vunpack.c.l.b16 %v289
    %v990 = vunpack.c.h.b16 %v289
    %v991 = vunpack.c.l.b16 %v290
    %v992 = vunpack.c.h.b16 %v290
    %v993 = vunpack.c.l.b16 %v291
    %v994 = vunpack.c.h.b16 %v291
    %v995 = vunpack.c.l.b16 %v292
    %v996 = vunpack.c.h.b16 %v292
    %v997 = vunpack.c.l.b16 %v293
    %v998 = vunpack.c.h.b16 %v293
    %v999 = vunpack.c.l.b16 %v294
    %v1000 = vunpack.c.h.b16 %v294
    %v1001 = vunpack.c.l.b16 %v295
    %v1002 = vunpack.c.h.b16 %v295
    %v1003 = vunpack.c.l.b16 %v296
    %v1004 = vunpack.c.h.b16 %v296
    %v1005 = vunpack.c.l.b16 %v297
    %v1006 = vunpack.c.h.b16 %v297
    %v1007 = vunpack.c.l.b16 %v298
    %v1008 = vunpack.c.h.b16 %v298
    %v1009 = vunpack.c.l.b16 %v299
    %v1010 = vunpack.c.h.b16 %v299
    %v1011 = vunpack.c.l.b16 %v300
    %v1012 = vunpack.c.h.b16 %v300
    %v1013 = vunpack.c.l.b16 %v301
    %v1014 = vunpack.c.h.b16 %v301
    %v1015 = vunpack.c.l.b16 %v302
    %v1016 = vunpack.c.h.b16 %v302
    %v1017 = vunpack.c.l.b16 %v303
    %v1018 = vunpack.c.h.b16 %v303
    %v1019 = vunpack.c.l.b16 %v304
    %v1020 = vunpack.c.h.b16 %v304
    %v1021 = vunpack.c.l.b16 %v305
    %v1022 = vunpack.c.h.b16 %v305
    %v1023 = vunpack.c.l.b16 %v306
    %v1024 = vunpack.c.h.b16 %v306
    %v1025 = vunpack.c.l.b16 %v307
    %v1026 = vunpack.c.h.b16 %v307
    %v1027 = vunpack.c.l.b16 %v308
    %v1028 = vunpack.c.h.b16 %v308
    %v1029 = vunpack.c.l.b16 %v309
    %v1030 = vunpack.c.h.b16 %v309
    %v1031 = vunpack.c.l.b16 %v310
    %v1032 = vunpack.c.h.b16 %v310
    %v1033 = vunpack.c.l.b16 %v311
    %v1034 = vunpack.c.h.b16 %v311
    %v1035 = vunpack.c.l.b16 %v312
    %v1036 = vunpack.c.h.b16 %v312
    %v1037 = vunpack.c.l.b16 %v313
    %v1038 = vunpack.c.h.b16 %v313
    %v1039 = vunpack.c.l.b16 %v314
    %v1040 = vunpack.c.h.b16 %v314
    %v1041 = vunpack.c.l.b16 %v315
    %v1042 = vunpack.c.h.b16 %v315
    %v1043 = vunpack.c.l.b16 %v316
    %v1044 = vunpack.c.h.b16 %v316
    %v1045 = vunpack.c.l.b16 %v317
    %v1046 = vunpack.c.h.b16 %v317
    %v1047 = vunpack.c.l.b16 %v318
    %v1048 = vunpack.c.h.b16 %v318
    %v1049 = vunpack.c.l.b16 %v319
    %v1050 = vunpack.c.h.b16 %v319
    %v1051 = vunpack.c.l.b16 %v320
    %v1052 = vunpack.c.h.b16 %v320
    %v1053 = vunpack.c.l.b16 %v321
    %v1054 = vunpack.c.h.b16 %v321
    %v1055 = vunpack.c.l.b16 %v322
    %v1056 = vunpack.c.h.b16 %v322
    %v1057 = vunpack.c.l.b16 %v323
    %v1058 = vunpack.c.h.b16 %v323
    %v1059 = vunpack.c.l.b16 %v324
    %v1060 = vunpack.c.h.b16 %v324
    %v1061 = vunpack.c.l.b16 %v325
    %v1062 = vunpack.c.h.b16 %v325
    %v1063 = vunpack.c.l.b16 %v326
    %v1064 = vunpack.c.h.b16 %v326
    %v1065 = vunpack.c.l.b16 %v327
    %v1066 = vunpack.c.h.b16 %v327
    %v1067 = vunpack.c.l.b16 %v328
    %v1068 = vunpack.c.h.b16 %v328
    %v1069 = vunpack.c.l.b16 %v329
    %v1070 = vunpack.c.h.b16 %v329
    %v1071 = vunpack.c.l.b16 %v330
    %v1072 = vunpack.c.h.b16 %v330
    %v1073 = vunpack.c.l.b16 %v331
    %v1074 = vunpack.c.h.b16 %v331
    %v1075 = vunpack.c.l.b16 %v332
    %v1076 = vunpack.c.h.b16 %v332
    %v1077 = vunpack.c.l.b16 %v333
    %v1078 = vunpack.c.h.b16 %v333
    %v1079 = vunpack.c.l.b16 %v334
    %v1080 = vunpack.c.h.b16 %v334
    %v1081 = vunpack.c.l.b16 %v335
    %v1082 = vunpack.c.h.b16 %v335
    %v1083 = vunpack.c.l.b16 %v336
    %v1084 = vunpack.c.h.b16 %v336
    %v1085 = vunpack.c.l.b16 %v337
    %v1086 = vunpack.c.h.b16 %v337
    %v1087 = vunpack.c.l.b16 %v338
    %v1088 = vunpack.c.h.b16 %v338
    %v1089 = vunpack.c.l.b16 %v339
    %v1090 = vunpack.c.h.b16 %v339
    %v1091 = vunpack.c.l.b16 %v340
    %v1092 = vunpack.c.h.b16 %v340
    %v1093 = vunpack.c.l.b16 %v341
    %v1094 = vunpack.c.h.b16 %v341
    %v1095 = vunpack.c.l.b16 %v342
    %v1096 = vunpack.c.h.b16 %v342
    %v1097 = vunpack.c.l.b16 %v343
    %v1098 = vunpack.c.h.b16 %v343
    %v1099 = vunpack.c.l.b16 %v344
    %v1100 = vunpack.c.h.b16 %v344
    %v1101 = vunpack.c.l.b16 %v345
    %v1102 = vunpack.c.h.b16 %v345
    %v1103 = vunpack.c.l.b16 %v346
    %v1104 = vunpack.c.h.b16 %v346
    %v1105 = vunpack.c.l.b16 %v347
    %v1106 = vunpack.c.h.b16 %v347
    %v1107 = vunpack.c.l.b16 %v348
    %v1108 = vunpack.c.h.b16 %v348
    %v1109 = vunpack.c.l.b16 %v349
    %v1110 = vunpack.c.h.b16 %v349
    %v1111 = vunpack.c.l.b16 %v350
    %v1112 = vunpack.c.h.b16 %v350
    %v1113 = vunpack.c.l.b16 %v351
    %v1114 = vunpack.c.h.b16 %v351
    %v1115 = vunpack.c.l.b16 %v352
    %v1116 = vunpack.c.h.b16 %v352
    %v1117 = vunpack.c.l.b16 %v353
    %v1118 = vunpack.c.h.b16 %v353
    %v1119 = vunpack.c.l.b16 %v354
    %v1120 = vunpack.c.h.b16 %v354
    %v1121 = vunpack.c.l.b16 %v355
    %v1122 = vunpack.c.h.b16 %v355
    %v1123 = vunpack.c.l.b16 %v356
    %v1124 = vunpack.c.h.b16 %v356
    %v1125 = vunpack.c.l.b16 %v357
    %v1126 = vunpack.c.h.b16 %v357
    %v1127 = vunpack.c.l.b16 %v358
    %v1128 = vunpack.c.h.b16 %v358
    %v1129 = vunpack.c.l.b16 %v359
    %v1130 = vunpack.c.h.b16 %v359
    %v1131 = vunpack.c.l.b16 %v360
    %v1132 = vunpack.c.h.b16 %v360
    %v1133 = vunpack.c.l.b16 %v361
    %v1134 = vunpack.c.h.b16 %v361
    %v1135 = vunpack.c.l.b16 %v362
    %v1136 = vunpack.c.h.b16 %v362
    %v1137 = vunpack.c.l.b16 %v363
    %v1138 = vunpack.c.h.b16 %v363
    %v1139 = vunpack.c.l.b16 %v364
    %v1140 = vunpack.c.h.b16 %v364
    %v1141 = vunpack.c.l.b16 %v365
    %v1142 = vunpack.c.h.b16 %v365
    %v1143 = vunpack.c.l.b16 %v366
    %v1144 = vunpack.c.h.b16 %v366
    %v1145 = vunpack.c.l.b16 %v367
    %v1146 = vunpack.c.h.b16 %v367
    %v1147 = vunpack.c.l.b16 %v368
    %v1148 = vunpack.c.h.b16 %v368
    %v1149 = vunpack.c.l.b16 %v369
    %v1150 = vunpack.c.h.b16 %v369
    %v1151 = vunpack.c.l.b16 %v370
    %v1152 = vunpack.c.h.b16 %v370
    %v1153 = vunpack.c.l.b16 %v371
    %v1154 = vunpack.c.h.b16 %v371
    %v1155 = vunpack.c.l.b16 %v372
    %v1156 = vunpack.c.h.b16 %v372
    %v1157 = vunpack.c.l.b16 %v373
    %v1158 = vunpack.c.h.b16 %v373
    %v1159 = vunpack.c.l.b16 %v374
    %v1160 = vunpack.c.h.b16 %v374
    %v1161 = vunpack.c.l.b16 %v375
    %v1162 = vunpack.c.h.b16 %v375
    %v1163 = vunpack.c.l.b16 %v376
    %v1164 = vunpack.c.h.b16 %v376
    %v1165 = vunpack.c.l.b16 %v377
    %v1166 = vunpack.c.h.b16 %v377
    %v1167 = vunpack.c.l.b16 %v378
    %v1168 = vunpack.c.h.b16 %v378
    %v1169 = vpack.c.b16 %v661, %v657
    %v1170 = vpack.c.b16 %v662, %v658
    %v1171 = vpack.c.b16 %v663, %v659
    %v1172 = vpack.c.b16 %v664, %v660
    %v1173 = vpack.c.b16 %v669, %v665
    %v1174 = vpack.c.b16 %v670, %v666
    %v1175 = vpack.c.b16 %v671, %v667
    %v1176 = vpack.c.b16 %v672, %v668
    %v1177 = vpack.c.b16 %v677, %v673
    %v1178 = vpack.c.b16 %v678, %v674
    %v1179 = vpack.c.b16 %v679, %v675
    %v1180 = vpack.c.b16 %v680, %v676
    %v1181 = vpack.c.b16 %v685, %v681
    %v1182 = vpack.c.b16 %v686, %v682
    %v1183 = vpack.c.b16 %v687, %v683
    %v1184 = vpack.c.b16 %v688, %v684
    %v1185 = vpack.c.b16 %v693, %v689
    %v1186 = vpack.c.b16 %v694, %v690
    %v1187 = vpack.c.b16 %v695, %v691
    %v1188 = vpack.c.b16 %v696, %v692
    %v1189 = vpack.c.b16 %v701, %v697
    %v1190 = vpack.c.b16 %v702, %v698
    %v1191 = vpack.c.b16 %v703, %v699
    %v1192 = vpack.c.b16 %v704, %v700
    %v1193 = vpack.c.b16 %v709, %v705
    %v1194 = vpack.c.b16 %v710, %v706
    %v1195 = vpack.c.b16 %v711, %v707
    %v1196 = vpack.c.b16 %v712, %v708
    %v1197 = vpack.c.b16 %v717, %v713
    %v1198 = vpack.c.b16 %v718, %v714
    %v1199 = vpack.c.b16 %v719, %v715
    %v1200 = vpack.c.b16 %v720, %v716
    %v1201 = vpack.c.b16 %v725, %v721
    %v1202 = vpack.c.b16 %v726, %v722
    %v1203 = vpack.c.b16 %v727, %v723
    %v1204 = vpack.c.b16 %v728, %v724
    %v1205 = vpack.c.b16 %v733, %v729
    %v1206 = vpack.c.b16 %v734, %v730
    %v1207 = vpack.c.b16 %v735, %v731
    %v1208 = vpack.c.b16 %v736, %v732
    %v1209 = vpack.c.b16 %v741, %v737
    %v1210 = vpack.c.b16 %v742, %v738
    %v1211 = vpack.c.b16 %v743, %v739
    %v1212 = vpack.c.b16 %v744, %v740
    %v1213 = vpack.c.b16 %v749, %v745
    %v1214 = vpack.c.b16 %v750, %v746
    %v1215 = vpack.c.b16 %v751, %v747
    %v1216 = vpack.c.b16 %v752, %v748
    %v1217 = vpack.c.b16 %v757, %v753
    %v1218 = vpack.c.b16 %v758, %v754
    %v1219 = vpack.c.b16 %v759, %v755
    %v1220 = vpack.c.b16 %v760, %v756
    %v1221 = vpack.c.b16 %v765, %v761
    %v1222 = vpack.c.b16 %v766, %v762
    %v1223 = vpack.c.b16 %v767, %v763
    %v1224 = vpack.c.b16 %v768, %v764
    %v1225 = vpack.c.b16 %v773, %v769
    %v1226 = vpack.c.b16 %v774, %v770
    %v1227 = vpack.c.b16 %v775, %v771
    %v1228 = vpack.c.b16 %v776, %v772
    %v1229 = vpack.c.b16 %v781, %v777
    %v1230 = vpack.c.b16 %v782, %v778
    %v1231 = vpack.c.b16 %v783, %v779
    %v1232 = vpack.c.b16 %v784, %v780
    %v1233 = vpack.c.b16 %v789, %v785
    %v1234 = vpack.c.b16 %v790, %v786
    %v1235 = vpack.c.b16 %v791, %v787
    %v1236 = vpack.c.b16 %v792, %v788
    %v1237 = vpack.c.b16 %v797, %v793
    %v1238 = vpack.c.b16 %v798, %v794
    %v1239 = vpack.c.b16 %v799, %v795
    %v1240 = vpack.c.b16 %v800, %v796
    %v1241 = vpack.c.b16 %v805, %v801
    %v1242 = vpack.c.b16 %v806, %v802
    %v1243 = vpack.c.b16 %v807, %v803
    %v1244 = vpack.c.b16 %v808, %v804
    %v1245 = vpack.c.b16 %v813, %v809
    %v1246 = vpack.c.b16 %v814, %v810
    %v1247 = vpack.c.b16 %v815, %v811
    %v1248 = vpack.c.b16 %v816, %v812
    %v1249 = vpack.c.b16 %v821, %v817
    %v1250 = vpack.c.b16 %v822, %v818
    %v1251 = vpack.c.b16 %v823, %v819
    %v1252 = vpack.c.b16 %v824, %v820
    %v1253 = vpack.c.b16 %v829, %v825
    %v1254 = vpack.c.b16 %v830, %v826
    %v1255 = vpack.c.b16 %v831, %v827
    %v1256 = vpack.c.b16 %v832, %v828
    %v1257 = vpack.c.b16 %v837, %v833
    %v1258 = vpack.c.b16 %v838, %v834
    %v1259 = vpack.c.b16 %v839, %v835
    %v1260 = vpack.c.b16 %v840, %v836
    %v1261 = vpack.c.b16 %v845, %v841
    %v1262 = vpack.c.b16 %v846, %v842
    %v1263 = vpack.c.b16 %v847, %v843
    %v1264 = vpack.c.b16 %v848, %v844
    %v1265 = vpack.c.b16 %v853, %v849
    %v1266 = vpack.c.b16 %v854, %v850
    %v1267 = vpack.c.b16 %v855, %v851
    %v1268 = vpack.c.b16 %v856, %v852
    %v1269 = vpack.c.b16 %v861, %v857
    %v1270 = vpack.c.b16 %v862, %v858
    %v1271 = vpack.c.b16 %v863, %v859
    %v1272 = vpack.c.b16 %v864, %v860
    %v1273 = vpack.c.b16 %v869, %v865
    %v1274 = vpack.c.b16 %v870, %v866
    %v1275 = vpack.c.b16 %v871, %v867
    %v1276 = vpack.c.b16 %v872, %v868
    %v1277 = vpack.c.b16 %v877, %v873
    %v1278 = vpack.c.b16 %v878, %v874
    %v1279 = vpack.c.b16 %v879, %v875
    %v1280 = vpack.c.b16 %v880, %v876
    %v1281 = vpack.c.b16 %v885, %v881
    %v1282 = vpack.c.b16 %v886, %v882
    %v1283 = vpack.c.b16 %v887, %v883
    %v1284 = vpack.c.b16 %v888, %v884
    %v1285 = vpack.c.b16 %v893, %v889
    %v1286 = vpack.c.b16 %v894, %v890
    %v1287 = vpack.c.b16 %v895, %v891
    %v1288 = vpack.c.b16 %v896, %v892
    %v1289 = vpack.c.b16 %v901, %v897
    %v1290 = vpack.c.b16 %v902, %v898
    %v1291 = vpack.c.b16 %v903, %v899
    %v1292 = vpack.c.b16 %v904, %v900
    %v1293 = vpack.c.b16 %v909, %v905
    %v1294 = vpack.c.b16 %v910, %v906
    %v1295 = vpack.c.b16 %v911, %v907
    %v1296 = vpack.c.b16 %v912, %v908
    %v1297 = vpack.c.b16 %v917, %v913
    %v1298 = vpack.c.b16 %v918, %v914
    %v1299 = vpack.c.b16 %v919, %v915
    %v1300 = vpack.c.b16 %v920, %v916
    %v1301 = vpack.c.b16 %v925, %v921
    %v1302 = vpack.c.b16 %v926, %v922
    %v1303 = vpack.c.b16 %v927, %v923
    %v1304 = vpack.c.b16 %v928, %v924
    %v1305 = vpack.c.b16 %v933, %v929
    %v1306 = vpack.c.b16 %v934, %v930
    %v1307 = vpack.c.b16 %v935, %v931
    %v1308 = vpack.c.b16 %v936, %v932
    %v1309 = vpack.c.b16 %v941, %v937
    %v1310 = vpack.c.b16 %v942, %v938
    %v1311 = vpack.c.b16 %v943, %v939
    %v1312 = vpack.c.b16 %v944, %v940
    %v1313 = vpack.c.b16 %v949, %v945
    %v1314 = vpack.c.b16 %v950, %v946
    %v1315 = vpack.c.b16 %v951, %v947
    %v1316 = vpack.c.b16 %v952, %v948
    %v1317 = vpack.c.b16 %v957, %v953
    %v1318 = vpack.c.b16 %v958, %v954
    %v1319 = vpack.c.b16 %v959, %v955
    %v1320 = vpack.c.b16 %v960, %v956
    %v1321 = vpack.c.b16 %v965, %v961
    %v1322 = vpack.c.b16 %v966, %v962
    %v1323 = vpack.c.b16 %v967, %v963
    %v1324 = vpack.c.b16 %v968, %v964
    %v1325 = vpack.c.b16 %v973, %v969
    %v1326 = vpack.c.b16 %v974, %v970
    %v1327 = vpack.c.b16 %v975, %v971
    %v1328 = vpack.c.b16 %v976, %v972
    %v1329 = vpack.c.b16 %v981, %v977
    %v1330 = vpack.c.b16 %v982, %v978
    %v1331 = vpack.c.b16 %v983, %v979
    %v1332 = vpack.c.b16 %v984, %v980
    %v1333 = vpack.c.b16 %v989, %v985
    %v1334 = vpack.c.b16 %v990, %v986
    %v1335 = vpack.c.b16 %v991, %v987
    %v1336 = vpack.c.b16 %v992, %v988
    %v1337 = vpack.c.b16 %v997, %v993
    %v1338 = vpack.c.b16 %v998, %v994
    %v1339 = vpack.c.b16 %v999, %v995
    %v1340 = vpack.c.b16 %v1000, %v996
    %v1341 = vpack.c.b16 %v1005, %v1001
    %v1342 = vpack.c.b16 %v1006, %v1002
    %v1343 = vpack.c.b16 %v1007, %v1003
    %v1344 = vpack.c.b16 %v1008, %v1004
    %v1345 = vpack.c.b16 %v1013, %v1009
    %v1346 = vpack.c.b16 %v1014, %v1010
    %v1347 = vpack.c.b16 %v1015, %v1011
    %v1348 = vpack.c.b16 %v1016, %v1012
    %v1349 = vpack.c.b16 %v1021, %v1017
    %v1350 = vpack.c.b16 %v1022, %v1018
    %v1351 = vpack.c.b16 %v1023, %v1019
    %v1352 = vpack.c.b16 %v1024, %v1020
    %v1353 = vpack.c.b16 %v1029, %v1025
    %v1354 = vpack.c.b16 %v1030, %v1026
    %v1355 = vpack.c.b16 %v1031, %v1027
    %v1356 = vpack.c.b16 %v1032, %v1028
    %v1357 = vpack.c.b16 %v1037, %v1033
    %v1358 = vpack.c.b16 %v1038, %v1034
    %v1359 = vpack.c.b16 %v1039, %v1035
    %v1360 = vpack.c.b16 %v1040, %v1036
    %v1361 = vpack.c.b16 %v1045, %v1041
    %v1362 = vpack.c.b16 %v1046, %v1042
    %v1363 = vpack.c.b16 %v1047, %v1043
    %v1364 = vpack.c.b16 %v1048, %v1044
    %v1365 = vpack.c.b16 %v1053, %v1049
    %v1366 = vpack.c.b16 %v1054, %v1050
    %v1367 = vpack.c.b16 %v1055, %v1051
    %v1368 = vpack.c.b16 %v1056, %v1052
    %v1369 = vpack.c.b16 %v1061, %v1057
    %v1370 = vpack.c.b16 %v1062, %v1058
    %v1371 = vpack.c.b16 %v1063, %v1059
    %v1372 = vpack.c.b16 %v1064, %v1060
    %v1373 = vpack.c.b16 %v1069, %v1065
    %v1374 = vpack.c.b16 %v1070, %v1066
    %v1375 = vpack.c.b16 %v1071, %v1067
    %v1376 = vpack.c.b16 %v1072, %v1068
    %v1377 = vpack.c.b16 %v1077, %v1073
    %v1378 = vpack.c.b16 %v1078, %v1074
    %v1379 = vpack.c.b16 %v1079, %v1075
    %v1380 = vpack.c.b16 %v1080, %v1076
    %v1381 = vpack.c.b16 %v1085, %v1081
    %v1382 = vpack.c.b16 %v1086, %v1082
    %v1383 = vpack.c.b16 %v1087, %v1083
    %v1384 = vpack.c.b16 %v1088, %v1084
    %v1385 = vpack.c.b16 %v1093, %v1089
    %v1386 = vpack.c.b16 %v1094, %v1090
    %v1387 = vpack.c.b16 %v1095, %v1091
    %v1388 = vpack.c.b16 %v1096, %v1092
    %v1389 = vpack.c.b16 %v1101, %v1097
    %v1390 = vpack.c.b16 %v1102, %v1098
    %v1391 = vpack.c.b16 %v1103, %v1099
    %v1392 = vpack.c.b16 %v1104, %v1100
    %v1393 = vpack.c.b16 %v1109, %v1105
    %v1394 = vpack.c.b16 %v1110, %v1106
    %v1395 = vpack.c.b16 %v1111, %v1107
    %v1396 = vpack.c.b16 %v1112, %v1108
    %v1397 = vpack.c.b16 %v1117, %v1113
    %v1398 = vpack.c.b16 %v1118, %v1114
    %v1399 = vpack.c.b16 %v1119, %v1115
    %v1400 = vpack.c.b16 %v1120, %v1116
    %v1401 = vpack.c.b16 %v1125, %v1121
    %v1402 = vpack.c.b16 %v1126, %v1122
    %v1403 = vpack.c.b16 %v1127, %v1123
    %v1404 = vpack.c.b16 %v1128, %v1124
    %v1405 = vpack.c.b16 %v1133, %v1129
    %v1406 = vpack.c.b16 %v1134, %v1130
    %v1407 = vpack.c.b16 %v1135, %v1131
    %v1408 = vpack.c.b16 %v1136, %v1132
    %v1409 = vpack.c.b16 %v1141, %v1137
    %v1410 = vpack.c.b16 %v1142, %v1138
    %v1411 = vpack.c.b16 %v1143, %v1139
    %v1412 = vpack.c.b16 %v1144, %v1140
    %v1413 = vpack.c.b16 %v1149, %v1145
    %v1414 = vpack.c.b16 %v1150, %v1146
    %v1415 = vpack.c.b16 %v1151, %v1147
    %v1416 = vpack.c.b16 %v1152, %v1148
    %v1417 = vpack.c.b16 %v1157, %v1153
    %v1418 = vpack.c.b16 %v1158, %v1154
    %v1419 = vpack.c.b16 %v1159, %v1155
    %v1420 = vpack.c.b16 %v1160, %v1156
    %v1421 = vpack.c.b16 %v1165, %v1161
    %v1422 = vpack.c.b16 %v1166, %v1162
    %v1423 = vpack.c.b16 %v1167, %v1163
    %v1424 = vpack.c.b16 %v1168, %v1164
    %1681 = vmatprep.subr.bf16.mxu0 %v1170
    %1682 = vmatpush1.bf16.msra.mxu0 %v1169
    %1683 = vmatprep.subr.bf16.mxu0 %v1174
    %1684 = vmatpush1.bf16.msra.mxu0 %v1173
    %1685 = vmatprep.subr.bf16.mxu0 %v1178
    %1686 = vmatpush1.bf16.msra.mxu0 %v1177
    %1687 = vmatprep.subr.bf16.mxu0 %v1182
    %1688 = vmatpush1.bf16.msra.mxu0 %v1181
    %1689 = vmatprep.subr.bf16.mxu0 %v1186
    %1690 = vmatpush1.bf16.msra.mxu0 %v1185
    %1691 = vmatprep.subr.bf16.mxu0 %v1190
    %1692 = vmatpush1.bf16.msra.mxu0 %v1189
    %1693 = vmatprep.subr.bf16.mxu0 %v1194
    %1694 = vmatpush1.bf16.msra.mxu0 %v1193
    %1695 = vmatprep.subr.bf16.mxu0 %v1198
    %1696 = vmatpush1.bf16.msra.mxu0 %v1197
    %1697 = vmatprep.subr.bf16.mxu0 %v1202
    %1698 = vmatpush1.bf16.msra.mxu0 %v1201
    %1699 = vmatprep.subr.bf16.mxu0 %v1206
    %1700 = vmatpush1.bf16.msra.mxu0 %v1205
    %1701 = vmatprep.subr.bf16.mxu0 %v1210
    %1702 = vmatpush1.bf16.msra.mxu0 %v1209
    %1703 = vmatprep.subr.bf16.mxu0 %v1214
    %1704 = vmatpush1.bf16.msra.mxu0 %v1213
    %1705 = vmatprep.subr.bf16.mxu0 %v1218
    %1706 = vmatpush1.bf16.msra.mxu0 %v1217
    %1707 = vmatprep.subr.bf16.mxu0 %v1222
    %1708 = vmatpush1.bf16.msra.mxu0 %v1221
    %1709 = vmatprep.subr.bf16.mxu0 %v1226
    %1710 = vmatpush1.bf16.msra.mxu0 %v1225
    %1711 = vmatprep.subr.bf16.mxu0 %v1230
    %1712 = vmatpush1.bf16.msra.mxu0 %v1229
    %1713 = vmatprep.mubr.bf16.mxu0 %v116
    %1714 = vmatmul.mubr.bf16.gmra.mrb[0].mxu0 %v115
    %v1715 = vpop.f32.mrb[0].mxu0
    %v1716 = vadd.f32 %v384, %v1715
    %v1717 = vpop.f32.mrb[0].mxu0
    %v1718 = vadd.f32 %v388, %v1717
    %v1719 = vpop.f32.mrb[0].mxu0
    %v1720 = vpop.f32.mrb[0].mxu0
    %1721 = vdwg.mxu0
    %1722 = vmatprep.subr.bf16.mxu0 %v1234
    %1723 = vmatpush1.bf16.msra.mxu0 %v1233
    %1724 = vmatprep.subr.bf16.mxu0 %v1238
    %1725 = vmatpush1.bf16.msra.mxu0 %v1237
    %1726 = vmatprep.subr.bf16.mxu0 %v1242
    %1727 = vmatpush1.bf16.msra.mxu0 %v1241
    %1728 = vmatprep.subr.bf16.mxu0 %v1246
    %1729 = vmatpush1.bf16.msra.mxu0 %v1245
    %1730 = vmatprep.subr.bf16.mxu0 %v1250
    %1731 = vmatpush1.bf16.msra.mxu0 %v1249
    %1732 = vmatprep.subr.bf16.mxu0 %v1254
    %1733 = vmatpush1.bf16.msra.mxu0 %v1253
    %1734 = vmatprep.subr.bf16.mxu0 %v1258
    %1735 = vmatpush1.bf16.msra.mxu0 %v1257
    %1736 = vmatprep.subr.bf16.mxu0 %v1262
    %1737 = vmatpush1.bf16.msra.mxu0 %v1261
    %1738 = vmatprep.subr.bf16.mxu0 %v1266
    %1739 = vmatpush1.bf16.msra.mxu0 %v1265
    %1740 = vmatprep.subr.bf16.mxu0 %v1270
    %1741 = vmatpush1.bf16.msra.mxu0 %v1269
    %1742 = vmatprep.subr.bf16.mxu0 %v1274
    %1743 = vmatpush1.bf16.msra.mxu0 %v1273
    %1744 = vmatprep.subr.bf16.mxu0 %v1278
    %1745 = vmatpush1.bf16.msra.mxu0 %v1277
    %1746 = vmatprep.subr.bf16.mxu0 %v1282
    %1747 = vmatpush1.bf16.msra.mxu0 %v1281
    %1748 = vmatprep.subr.bf16.mxu0 %v1286
    %1749 = vmatpush1.bf16.msra.mxu0 %v1285
    %1750 = vmatprep.subr.bf16.mxu0 %v1290
    %1751 = vmatpush1.bf16.msra.mxu0 %v1289
    %1752 = vmatprep.subr.bf16.mxu0 %v1294
    %1753 = vmatpush1.bf16.msra.mxu0 %v1293
    %1754 = vmatprep.mubr.bf16.mxu0 %v118
    %1755 = vmatmul.mubr.bf16.gmra.mrb[0].mxu0 %v117
    %v1756 = vpop.f32.mrb[0].mxu0
    %v1757 = vadd.f32 %v1716, %v1756
    %v1758 = vpop.f32.mrb[0].mxu0
    %v1759 = vadd.f32 %v1718, %v1758
    %v1760 = vpop.f32.mrb[0].mxu0
    %v1761 = vpop.f32.mrb[0].mxu0
    %1762 = vdwg.mxu0
    %1763 = vmatprep.subr.bf16.mxu0 %v1298
    %1764 = vmatpush1.bf16.msra.mxu0 %v1297
    %1765 = vmatprep.subr.bf16.mxu0 %v1302
    %1766 = vmatpush1.bf16.msra.mxu0 %v1301
    %1767 = vmatprep.subr.bf16.mxu0 %v1306
    %1768 = vmatpush1.bf16.msra.mxu0 %v1305
    %1769 = vmatprep.subr.bf16.mxu0 %v1310
    %1770 = vmatpush1.bf16.msra.mxu0 %v1309
    %1771 = vmatprep.subr.bf16.mxu0 %v1314
    %1772 = vmatpush1.bf16.msra.mxu0 %v1313
    %1773 = vmatprep.subr.bf16.mxu0 %v1318
    %1774 = vmatpush1.bf16.msra.mxu0 %v1317
    %1775 = vmatprep.subr.bf16.mxu0 %v1322
    %1776 = vmatpush1.bf16.msra.mxu0 %v1321
    %1777 = vmatprep.subr.bf16.mxu0 %v1326
    %1778 = vmatpush1.bf16.msra.mxu0 %v1325
    %1779 = vmatprep.subr.bf16.mxu0 %v1330
    %1780 = vmatpush1.bf16.msra.mxu0 %v1329
    %1781 = vmatprep.subr.bf16.mxu0 %v1334
    %1782 = vmatpush1.bf16.msra.mxu0 %v1333
    %1783 = vmatprep.subr.bf16.mxu0 %v1338
    %1784 = vmatpush1.bf16.msra.mxu0 %v1337
    %1785 = vmatprep.subr.bf16.mxu0 %v1342
    %1786 = vmatpush1.bf16.msra.mxu0 %v1341
    %1787 = vmatprep.subr.bf16.mxu0 %v1346
    %1788 = vmatpush1.bf16.msra.mxu0 %v1345
    %1789 = vmatprep.subr.bf16.mxu0 %v1350
    %1790 = vmatpush1.bf16.msra.mxu0 %v1349
    %1791 = vmatprep.subr.bf16.mxu0 %v1354
    %1792 = vmatpush1.bf16.msra.mxu0 %v1353
    %1793 = vmatprep.subr.bf16.mxu0 %v1358
    %1794 = vmatpush1.bf16.msra.mxu0 %v1357
    %1795 = vmatprep.mubr.bf16.mxu0 %v120
    %1796 = vmatmul.mubr.bf16.gmra.mrb[0].mxu0 %v119
    %v1797 = vpop.f32.mrb[0].mxu0
    %v1798 = vadd.f32 %v1757, %v1797
    %v1799 = vpop.f32.mrb[0].mxu0
    %v1800 = vadd.f32 %v1759, %v1799
    %v1801 = vpop.f32.mrb[0].mxu0
    %v1802 = vpop.f32.mrb[0].mxu0
    %1803 = vdwg.mxu0
    %1804 = vmatprep.subr.bf16.mxu0 %v1362
    %1805 = vmatpush1.bf16.msra.mxu0 %v1361
    %1806 = vmatprep.subr.bf16.mxu0 %v1366
    %1807 = vmatpush1.bf16.msra.mxu0 %v1365
    %1808 = vmatprep.subr.bf16.mxu0 %v1370
    %1809 = vmatpush1.bf16.msra.mxu0 %v1369
    %1810 = vmatprep.subr.bf16.mxu0 %v1374
    %1811 = vmatpush1.bf16.msra.mxu0 %v1373
    %1812 = vmatprep.subr.bf16.mxu0 %v1378
    %1813 = vmatpush1.bf16.msra.mxu0 %v1377
    %1814 = vmatprep.subr.bf16.mxu0 %v1382
    %1815 = vmatpush1.bf16.msra.mxu0 %v1381
    %1816 = vmatprep.subr.bf16.mxu0 %v1386
    %1817 = vmatpush1.bf16.msra.mxu0 %v1385
    %1818 = vmatprep.subr.bf16.mxu0 %v1390
    %1819 = vmatpush1.bf16.msra.mxu0 %v1389
    %1820 = vmatprep.subr.bf16.mxu0 %v1394
    %1821 = vmatpush1.bf16.msra.mxu0 %v1393
    %1822 = vmatprep.subr.bf16.mxu0 %v1398
    %1823 = vmatpush1.bf16.msra.mxu0 %v1397
    %1824 = vmatprep.subr.bf16.mxu0 %v1402
    %1825 = vmatpush1.bf16.msra.mxu0 %v1401
    %1826 = vmatprep.subr.bf16.mxu0 %v1406
    %1827 = vmatpush1.bf16.msra.mxu0 %v1405
    %1828 = vmatprep.subr.bf16.mxu0 %v1410
    %1829 = vmatpush1.bf16.msra.mxu0 %v1409
    %1830 = vmatprep.subr.bf16.mxu0 %v1414
    %1831 = vmatpush1.bf16.msra.mxu0 %v1413
    %1832 = vmatprep.subr.bf16.mxu0 %v1418
    %1833 = vmatpush1.bf16.msra.mxu0 %v1417
    %1834 = vmatprep.subr.bf16.mxu0 %v1422
    %1835 = vmatpush1.bf16.msra.mxu0 %v1421
    %1836 = vmatprep.mubr.bf16.mxu0 %v122
    %1837 = vmatmul.mubr.bf16.gmra.mrb[0].mxu0 %v121
    %v1838 = vpop.f32.mrb[0].mxu0
    %v1839 = vadd.f32 %v1798, %v1838
    %v1840 = vpop.f32.mrb[0].mxu0
    %v1841 = vadd.f32 %v1800, %v1840
    %v1842 = vpop.f32.mrb[0].mxu0
    %v1843 = vpop.f32.mrb[0].mxu0
    %1844 = vdwg.mxu0
    %1845 = vmatprep.subr.bf16.mxu0 %v1172
    %1846 = vmatpush1.bf16.msra.mxu0 %v1171
    %1847 = vmatprep.subr.bf16.mxu0 %v1176
    %1848 = vmatpush1.bf16.msra.mxu0 %v1175
    %1849 = vmatprep.subr.bf16.mxu0 %v1180
    %1850 = vmatpush1.bf16.msra.mxu0 %v1179
    %1851 = vmatprep.subr.bf16.mxu0 %v1184
    %1852 = vmatpush1.bf16.msra.mxu0 %v1183
    %1853 = vmatprep.subr.bf16.mxu0 %v1188
    %1854 = vmatpush1.bf16.msra.mxu0 %v1187
    %1855 = vmatprep.subr.bf16.mxu0 %v1192
    %1856 = vmatpush1.bf16.msra.mxu0 %v1191
    %1857 = vmatprep.subr.bf16.mxu0 %v1196
    %1858 = vmatpush1.bf16.msra.mxu0 %v1195
    %1859 = vmatprep.subr.bf16.mxu0 %v1200
    %1860 = vmatpush1.bf16.msra.mxu0 %v1199
    %1861 = vmatprep.subr.bf16.mxu0 %v1204
    %1862 = vmatpush1.bf16.msra.mxu0 %v1203
    %1863 = vmatprep.subr.bf16.mxu0 %v1208
    %1864 = vmatpush1.bf16.msra.mxu0 %v1207
    %1865 = vmatprep.subr.bf16.mxu0 %v1212
    %1866 = vmatpush1.bf16.msra.mxu0 %v1211
    %1867 = vmatprep.subr.bf16.mxu0 %v1216
    %1868 = vmatpush1.bf16.msra.mxu0 %v1215
    %1869 = vmatprep.subr.bf16.mxu0 %v1220
    %1870 = vmatpush1.bf16.msra.mxu0 %v1219
    %1871 = vmatprep.subr.bf16.mxu0 %v1224
    %1872 = vmatpush1.bf16.msra.mxu0 %v1223
    %1873 = vmatprep.subr.bf16.mxu0 %v1228
    %1874 = vmatpush1.bf16.msra.mxu0 %v1227
    %1875 = vmatprep.subr.bf16.mxu0 %v1232
    %1876 = vmatpush1.bf16.msra.mxu0 %v1231
    %1877 = vmatprep.mubr.bf16.mxu0 %v116
    %1878 = vmatmul.mubr.bf16.gmra.mrb[0].mxu0 %v115
    %v1879 = vpop.f32.mrb[0].mxu0
    %v1880 = vadd.f32 %v392, %v1879
    %v1881 = vpop.f32.mrb[0].mxu0
    %v1882 = vadd.f32 %v396, %v1881
    %v1883 = vpop.f32.mrb[0].mxu0
    %v1884 = vpop.f32.mrb[0].mxu0
    %1885 = vdwg.mxu0
    %1886 = vmatprep.subr.bf16.mxu0 %v1236
    %1887 = vmatpush1.bf16.msra.mxu0 %v1235
    %1888 = vmatprep.subr.bf16.mxu0 %v1240
    %1889 = vmatpush1.bf16.msra.mxu0 %v1239
    %1890 = vmatprep.subr.bf16.mxu0 %v1244
    %1891 = vmatpush1.bf16.msra.mxu0 %v1243
    %1892 = vmatprep.subr.bf16.mxu0 %v1248
    %1893 = vmatpush1.bf16.msra.mxu0 %v1247
    %1894 = vmatprep.subr.bf16.mxu0 %v1252
    %1895 = vmatpush1.bf16.msra.mxu0 %v1251
    %1896 = vmatprep.subr.bf16.mxu0 %v1256
    %1897 = vmatpush1.bf16.msra.mxu0 %v1255
    %1898 = vmatprep.subr.bf16.mxu0 %v1260
    %1899 = vmatpush1.bf16.msra.mxu0 %v1259
    %1900 = vmatprep.subr.bf16.mxu0 %v1264
    %1901 = vmatpush1.bf16.msra.mxu0 %v1263
    %1902 = vmatprep.subr.bf16.mxu0 %v1268
    %1903 = vmatpush1.bf16.msra.mxu0 %v1267
    %1904 = vmatprep.subr.bf16.mxu0 %v1272
    %1905 = vmatpush1.bf16.msra.mxu0 %v1271
    %1906 = vmatprep.subr.bf16.mxu0 %v1276
    %1907 = vmatpush1.bf16.msra.mxu0 %v1275
    %1908 = vmatprep.subr.bf16.mxu0 %v1280
    %1909 = vmatpush1.bf16.msra.mxu0 %v1279
    %1910 = vmatprep.subr.bf16.mxu0 %v1284
    %1911 = vmatpush1.bf16.msra.mxu0 %v1283
    %1912 = vmatprep.subr.bf16.mxu0 %v1288
    %1913 = vmatpush1.bf16.msra.mxu0 %v1287
    %1914 = vmatprep.subr.bf16.mxu0 %v1292
    %1915 = vmatpush1.bf16.msra.mxu0 %v1291
    %1916 = vmatprep.subr.bf16.mxu0 %v1296
    %1917 = vmatpush1.bf16.msra.mxu0 %v1295
    %1918 = vmatprep.mubr.bf16.mxu0 %v118
    %1919 = vmatmul.mubr.bf16.gmra.mrb[0].mxu0 %v117
    %v1920 = vpop.f32.mrb[0].mxu0
    %v1921 = vadd.f32 %v1880, %v1920
    %v1922 = vpop.f32.mrb[0].mxu0
    %v1923 = vadd.f32 %v1882, %v1922
    %v1924 = vpop.f32.mrb[0].mxu0
    %v1925 = vpop.f32.mrb[0].mxu0
    %1926 = vdwg.mxu0
    %1927 = vmatprep.subr.bf16.mxu0 %v1300
    %1928 = vmatpush1.bf16.msra.mxu0 %v1299
    %1929 = vmatprep.subr.bf16.mxu0 %v1304
    %1930 = vmatpush1.bf16.msra.mxu0 %v1303
    %1931 = vmatprep.subr.bf16.mxu0 %v1308
    %1932 = vmatpush1.bf16.msra.mxu0 %v1307
    %1933 = vmatprep.subr.bf16.mxu0 %v1312
    %1934 = vmatpush1.bf16.msra.mxu0 %v1311
    %1935 = vmatprep.subr.bf16.mxu0 %v1316
    %1936 = vmatpush1.bf16.msra.mxu0 %v1315
    %1937 = vmatprep.subr.bf16.mxu0 %v1320
    %1938 = vmatpush1.bf16.msra.mxu0 %v1319
    %1939 = vmatprep.subr.bf16.mxu0 %v1324
    %1940 = vmatpush1.bf16.msra.mxu0 %v1323
    %1941 = vmatprep.subr.bf16.mxu0 %v1328
    %1942 = vmatpush1.bf16.msra.mxu0 %v1327
    %1943 = vmatprep.subr.bf16.mxu0 %v1332
    %1944 = vmatpush1.bf16.msra.mxu0 %v1331
    %1945 = vmatprep.subr.bf16.mxu0 %v1336
    %1946 = vmatpush1.bf16.msra.mxu0 %v1335
    %1947 = vmatprep.subr.bf16.mxu0 %v1340
    %1948 = vmatpush1.bf16.msra.mxu0 %v1339
    %1949 = vmatprep.subr.bf16.mxu0 %v1344
    %1950 = vmatpush1.bf16.msra.mxu0 %v1343
    %1951 = vmatprep.subr.bf16.mxu0 %v1348
    %1952 = vmatpush1.bf16.msra.mxu0 %v1347
    %1953 = vmatprep.subr.bf16.mxu0 %v1352
    %1954 = vmatpush1.bf16.msra.mxu0 %v1351
    %1955 = vmatprep.subr.bf16.mxu0 %v1356
    %1956 = vmatpush1.bf16.msra.mxu0 %v1355
    %1957 = vmatprep.subr.bf16.mxu0 %v1360
    %1958 = vmatpush1.bf16.msra.mxu0 %v1359
    %1959 = vmatprep.mubr.bf16.mxu0 %v120
    %1960 = vmatmul.mubr.bf16.gmra.mrb[0].mxu0 %v119
    %v1961 = vpop.f32.mrb[0].mxu0
    %v1962 = vadd.f32 %v1921, %v1961
    %v1963 = vpop.f32.mrb[0].mxu0
    %v1964 = vadd.f32 %v1923, %v1963
    %v1965 = vpop.f32.mrb[0].mxu0
    %v1966 = vpop.f32.mrb[0].mxu0
    %1967 = vdwg.mxu0
    %1968 = vmatprep.subr.bf16.mxu0 %v1364
    %1969 = vmatpush1.bf16.msra.mxu0 %v1363
    %1970 = vmatprep.subr.bf16.mxu0 %v1368
    %1971 = vmatpush1.bf16.msra.mxu0 %v1367
    %1972 = vmatprep.subr.bf16.mxu0 %v1372
    %1973 = vmatpush1.bf16.msra.mxu0 %v1371
    %1974 = vmatprep.subr.bf16.mxu0 %v1376
    %1975 = vmatpush1.bf16.msra.mxu0 %v1375
    %1976 = vmatprep.subr.bf16.mxu0 %v1380
    %1977 = vmatpush1.bf16.msra.mxu0 %v1379
    %1978 = vmatprep.subr.bf16.mxu0 %v1384
    %1979 = vmatpush1.bf16.msra.mxu0 %v1383
    %1980 = vmatprep.subr.bf16.mxu0 %v1388
    %1981 = vmatpush1.bf16.msra.mxu0 %v1387
    %1982 = vmatprep.subr.bf16.mxu0 %v1392
    %1983 = vmatpush1.bf16.msra.mxu0 %v1391
    %1984 = vmatprep.subr.bf16.mxu0 %v1396
    %1985 = vmatpush1.bf16.msra.mxu0 %v1395
    %1986 = vmatprep.subr.bf16.mxu0 %v1400
    %1987 = vmatpush1.bf16.msra.mxu0 %v1399
    %1988 = vmatprep.subr.bf16.mxu0 %v1404
    %1989 = vmatpush1.bf16.msra.mxu0 %v1403
    %1990 = vmatprep.subr.bf16.mxu0 %v1408
    %1991 = vmatpush1.bf16.msra.mxu0 %v1407
    %1992 = vmatprep.subr.bf16.mxu0 %v1412
    %1993 = vmatpush1.bf16.msra.mxu0 %v1411
    %1994 = vmatprep.subr.bf16.mxu0 %v1416
    %1995 = vmatpush1.bf16.msra.mxu0 %v1415
    %1996 = vmatprep.subr.bf16.mxu0 %v1420
    %1997 = vmatpush1.bf16.msra.mxu0 %v1419
    %1998 = vmatprep.subr.bf16.mxu0 %v1424
    %1999 = vmatpush1.bf16.msra.mxu0 %v1423
    %2000 = vmatprep.mubr.bf16.mxu0 %v122
    %2001 = vmatmul.mubr.bf16.gmra.mrb[0].mxu0 %v121
    %v2002 = vpop.f32.mrb[0].mxu0
    %v2003 = vadd.f32 %v1962, %v2002
    %v2004 = vpop.f32.mrb[0].mxu0
    %v2005 = vadd.f32 %v1964, %v2004
    %v2006 = vpop.f32.mrb[0].mxu0
    %v2007 = vpop.f32.mrb[0].mxu0
    %2008 = vdwg.mxu0
    %v2009 = vmax.f32 %v1839, 0.0
    %v2010 = vmax.f32 %v1841, 0.0
    %v2011 = vmax.f32 %v2003, 0.0
    %v2012 = vmax.f32 %v2005, 0.0
    %v2013 = vpack.c.bf16 %v2009, %v2009
    %v2014 = vpack.c.bf16 %v2010, %v2010
    %v2015 = vpack.c.bf16 %v2011, %v2011
    %v2016 = vpack.c.bf16 %v2012, %v2012
    %v2017 = vld [vmem:[#allocation14] sm:$0xff]
    %v2018 = vld [vmem:[#allocation14 + $0x8] sm:$0xff]
    %v2019 = vld [vmem:[#allocation14 + $0x10] sm:$0xff]
    %v2020 = vld [vmem:[#allocation14 + $0x18] sm:$0xff]
    %v2021 = vld [vmem:[#allocation14 + $0x20] sm:$0xff]
    %v2022 = vld [vmem:[#allocation14 + $0x28] sm:$0xff]
    %v2023 = vld [vmem:[#allocation14 + $0x30] sm:$0xff]
    %v2024 = vld [vmem:[#allocation14 + $0x38] sm:$0xff]
    %v2025 = vld [vmem:[#allocation14 + $0x40] sm:$0xff]
    %v2026 = vld [vmem:[#allocation14 + $0x48] sm:$0xff]
    %v2027 = vld [vmem:[#allocation14 + $0x50] sm:$0xff]
    %v2028 = vld [vmem:[#allocation14 + $0x58] sm:$0xff]
    %v2029 = vld [vmem:[#allocation14 + $0x60] sm:$0xff]
    %v2030 = vld [vmem:[#allocation14 + $0x68] sm:$0xff]
    %v2031 = vld [vmem:[#allocation14 + $0x70] sm:$0xff]
    %v2032 = vld [vmem:[#allocation14 + $0x78] sm:$0xff]
    %v2033 = vld [vmem:[#allocation14 + $0x80] sm:$0xff]
    %v2034 = vld [vmem:[#allocation14 + $0x88] sm:$0xff]
    %v2035 = vld [vmem:[#allocation14 + $0x90] sm:$0xff]
    %v2036 = vld [vmem:[#allocation14 + $0x98] sm:$0xff]
    %v2037 = vld [vmem:[#allocation14 + $0xa0] sm:$0xff]
    %v2038 = vld [vmem:[#allocation14 + $0xa8] sm:$0xff]
    %v2039 = vld [vmem:[#allocation14 + $0xb0] sm:$0xff]
    %v2040 = vld [vmem:[#allocation14 + $0xb8] sm:$0xff]
    %v2041 = vld [vmem:[#allocation14 + $0xc0] sm:$0xff]
    %v2042 = vld [vmem:[#allocation14 + $0xc8] sm:$0xff]
    %v2043 = vld [vmem:[#allocation14 + $0xd0] sm:$0xff]
    %v2044 = vld [vmem:[#allocation14 + $0xd8] sm:$0xff]
    %v2045 = vld [vmem:[#allocation14 + $0xe0] sm:$0xff]
    %v2046 = vld [vmem:[#allocation14 + $0xe8] sm:$0xff]
    %v2047 = vld [vmem:[#allocation14 + $0xf0] sm:$0xff]
    %v2048 = vld [vmem:[#allocation14 + $0xf8] sm:$0xff]
    %v2049 = vld [vmem:[#allocation14 + $0x100] sm:$0xff]
    %v2050 = vld [vmem:[#allocation14 + $0x108] sm:$0xff]
    %v2051 = vld [vmem:[#allocation14 + $0x110] sm:$0xff]
    %v2052 = vld [vmem:[#allocation14 + $0x118] sm:$0xff]
    %v2053 = vld [vmem:[#allocation14 + $0x120] sm:$0xff]
    %v2054 = vld [vmem:[#allocation14 + $0x128] sm:$0xff]
    %v2055 = vld [vmem:[#allocation14 + $0x130] sm:$0xff]
    %v2056 = vld [vmem:[#allocation14 + $0x138] sm:$0xff]
    %v2057 = vld [vmem:[#allocation14 + $0x140] sm:$0xff]
    %v2058 = vld [vmem:[#allocation14 + $0x148] sm:$0xff]
    %v2059 = vld [vmem:[#allocation14 + $0x150] sm:$0xff]
    %v2060 = vld [vmem:[#allocation14 + $0x158] sm:$0xff]
    %v2061 = vld [vmem:[#allocation14 + $0x160] sm:$0xff]
    %v2062 = vld [vmem:[#allocation14 + $0x168] sm:$0xff]
    %v2063 = vld [vmem:[#allocation14 + $0x170] sm:$0xff]
    %v2064 = vld [vmem:[#allocation14 + $0x178] sm:$0xff]
    %v2065 = vld [vmem:[#allocation14 + $0x180] sm:$0xff]
    %v2066 = vld [vmem:[#allocation14 + $0x188] sm:$0xff]
    %v2067 = vld [vmem:[#allocation14 + $0x190] sm:$0xff]
    %v2068 = vld [vmem:[#allocation14 + $0x198] sm:$0xff]
    %v2069 = vld [vmem:[#allocation14 + $0x1a0] sm:$0xff]
    %v2070 = vld [vmem:[#allocation14 + $0x1a8] sm:$0xff]
    %v2071 = vld [vmem:[#allocation14 + $0x1b0] sm:$0xff]
    %v2072 = vld [vmem:[#allocation14 + $0x1b8] sm:$0xff]
    %v2073 = vld [vmem:[#allocation14 + $0x1c0] sm:$0xff]
    %v2074 = vld [vmem:[#allocation14 + $0x1c8] sm:$0xff]
    %v2075 = vld [vmem:[#allocation14 + $0x1d0] sm:$0xff]
    %v2076 = vld [vmem:[#allocation14 + $0x1d8] sm:$0xff]
    %v2077 = vld [vmem:[#allocation14 + $0x1e0] sm:$0xff]
    %v2078 = vld [vmem:[#allocation14 + $0x1e8] sm:$0xff]
    %v2079 = vld [vmem:[#allocation14 + $0x1f0] sm:$0xff]
    %v2080 = vld [vmem:[#allocation14 + $0x1f8] sm:$0xff]
    %v2081 = vld [vmem:[#allocation14 + $0x200] sm:$0xff]
    %v2082 = vld [vmem:[#allocation14 + $0x208] sm:$0xff]
    %v2083 = vld [vmem:[#allocation14 + $0x210] sm:$0xff]
    %v2084 = vld [vmem:[#allocation14 + $0x218] sm:$0xff]
    %v2085 = vld [vmem:[#allocation14 + $0x220] sm:$0xff]
    %v2086 = vld [vmem:[#allocation14 + $0x228] sm:$0xff]
    %v2087 = vld [vmem:[#allocation14 + $0x230] sm:$0xff]
    %v2088 = vld [vmem:[#allocation14 + $0x238] sm:$0xff]
    %v2089 = vld [vmem:[#allocation14 + $0x240] sm:$0xff]
    %v2090 = vld [vmem:[#allocation14 + $0x248] sm:$0xff]
    %v2091 = vld [vmem:[#allocation14 + $0x250] sm:$0xff]
    %v2092 = vld [vmem:[#allocation14 + $0x258] sm:$0xff]
    %v2093 = vld [vmem:[#allocation14 + $0x260] sm:$0xff]
    %v2094 = vld [vmem:[#allocation14 + $0x268] sm:$0xff]
    %v2095 = vld [vmem:[#allocation14 + $0x270] sm:$0xff]
    %v2096 = vld [vmem:[#allocation14 + $0x278] sm:$0xff]
    %v2097 = vld [vmem:[#allocation14 + $0x280] sm:$0xff]
    %v2098 = vld [vmem:[#allocation14 + $0x288] sm:$0xff]
    %v2099 = vld [vmem:[#allocation14 + $0x290] sm:$0xff]
    %v2100 = vld [vmem:[#allocation14 + $0x298] sm:$0xff]
    %v2101 = vld [vmem:[#allocation14 + $0x2a0] sm:$0xff]
    %v2102 = vld [vmem:[#allocation14 + $0x2a8] sm:$0xff]
    %v2103 = vld [vmem:[#allocation14 + $0x2b0] sm:$0xff]
    %v2104 = vld [vmem:[#allocation14 + $0x2b8] sm:$0xff]
    %v2105 = vld [vmem:[#allocation14 + $0x2c0] sm:$0xff]
    %v2106 = vld [vmem:[#allocation14 + $0x2c8] sm:$0xff]
    %v2107 = vld [vmem:[#allocation14 + $0x2d0] sm:$0xff]
    %v2108 = vld [vmem:[#allocation14 + $0x2d8] sm:$0xff]
    %v2109 = vld [vmem:[#allocation14 + $0x2e0] sm:$0xff]
    %v2110 = vld [vmem:[#allocation14 + $0x2e8] sm:$0xff]
    %v2111 = vld [vmem:[#allocation14 + $0x2f0] sm:$0xff]
    %v2112 = vld [vmem:[#allocation14 + $0x2f8] sm:$0xff]
    %v2113 = vld [vmem:[#allocation14 + $0x300] sm:$0xff]
    %v2114 = vld [vmem:[#allocation14 + $0x308] sm:$0xff]
    %v2115 = vld [vmem:[#allocation14 + $0x310] sm:$0xff]
    %v2116 = vld [vmem:[#allocation14 + $0x318] sm:$0xff]
    %v2117 = vld [vmem:[#allocation14 + $0x320] sm:$0xff]
    %v2118 = vld [vmem:[#allocation14 + $0x328] sm:$0xff]
    %v2119 = vld [vmem:[#allocation14 + $0x330] sm:$0xff]
    %v2120 = vld [vmem:[#allocation14 + $0x338] sm:$0xff]
    %v2121 = vld [vmem:[#allocation14 + $0x340] sm:$0xff]
    %v2122 = vld [vmem:[#allocation14 + $0x348] sm:$0xff]
    %v2123 = vld [vmem:[#allocation14 + $0x350] sm:$0xff]
    %v2124 = vld [vmem:[#allocation14 + $0x358] sm:$0xff]
    %v2125 = vld [vmem:[#allocation14 + $0x360] sm:$0xff]
    %v2126 = vld [vmem:[#allocation14 + $0x368] sm:$0xff]
    %v2127 = vld [vmem:[#allocation14 + $0x370] sm:$0xff]
    %v2128 = vld [vmem:[#allocation14 + $0x378] sm:$0xff]
    %v2129 = vld [vmem:[#allocation14 + $0x380] sm:$0xff]
    %v2130 = vld [vmem:[#allocation14 + $0x388] sm:$0xff]
    %v2131 = vld [vmem:[#allocation14 + $0x390] sm:$0xff]
    %v2132 = vld [vmem:[#allocation14 + $0x398] sm:$0xff]
    %v2133 = vld [vmem:[#allocation14 + $0x3a0] sm:$0xff]
    %v2134 = vld [vmem:[#allocation14 + $0x3a8] sm:$0xff]
    %v2135 = vld [vmem:[#allocation14 + $0x3b0] sm:$0xff]
    %v2136 = vld [vmem:[#allocation14 + $0x3b8] sm:$0xff]
    %v2137 = vld [vmem:[#allocation14 + $0x3c0] sm:$0xff]
    %v2138 = vld [vmem:[#allocation14 + $0x3c8] sm:$0xff]
    %v2139 = vld [vmem:[#allocation14 + $0x3d0] sm:$0xff]
    %v2140 = vld [vmem:[#allocation14 + $0x3d8] sm:$0xff]
    %v2141 = vld [vmem:[#allocation14 + $0x3e0] sm:$0xff]
    %v2142 = vld [vmem:[#allocation14 + $0x3e8] sm:$0xff]
    %v2143 = vld [vmem:[#allocation14 + $0x3f0] sm:$0xff]
    %v2144 = vld [vmem:[#allocation14 + $0x3f8] sm:$0xff]
    %v2145 = vld [vmem:[%s5] sm:$0xf]
    %v2147 = vlaneseq
    %v2148 = vshrl.u32 %v2147, 7
    %v2149 = vsub.s32 0, %v2148
    %v2150 = vrot.slane %v2145, %v2149
    %v2151 = vlaneseq
    %v2152 = vshrl.u32 %v2151, 7
    %v2153 = vsub.s32 1, %v2152
    %v2154 = vrot.slane %v2145, %v2153
    %v2155 = vlaneseq
    %v2156 = vshrl.u32 %v2155, 7
    %v2157 = vsub.s32 2, %v2156
    %v2158 = vrot.slane %v2145, %v2157
    %v2159 = vlaneseq
    %v2160 = vshrl.u32 %v2159, 7
    %v2161 = vsub.s32 3, %v2160
    %v2162 = vrot.slane %v2145, %v2161
    %v2295 = vunpack.c.l.b16 %v2017
    %v2296 = vunpack.c.h.b16 %v2017
    %v2297 = vunpack.c.l.b16 %v2018
    %v2298 = vunpack.c.h.b16 %v2018
    %v2299 = vunpack.c.l.b16 %v2019
    %v2300 = vunpack.c.h.b16 %v2019
    %v2301 = vunpack.c.l.b16 %v2020
    %v2302 = vunpack.c.h.b16 %v2020
    %v2303 = vunpack.c.l.b16 %v2021
    %v2304 = vunpack.c.h.b16 %v2021
    %v2305 = vunpack.c.l.b16 %v2022
    %v2306 = vunpack.c.h.b16 %v2022
    %v2307 = vunpack.c.l.b16 %v2023
    %v2308 = vunpack.c.h.b16 %v2023
    %v2309 = vunpack.c.l.b16 %v2024
    %v2310 = vunpack.c.h.b16 %v2024
    %v2311 = vunpack.c.l.b16 %v2025
    %v2312 = vunpack.c.h.b16 %v2025
    %v2313 = vunpack.c.l.b16 %v2026
    %v2314 = vunpack.c.h.b16 %v2026
    %v2315 = vunpack.c.l.b16 %v2027
    %v2316 = vunpack.c.h.b16 %v2027
    %v2317 = vunpack.c.l.b16 %v2028
    %v2318 = vunpack.c.h.b16 %v2028
    %v2319 = vunpack.c.l.b16 %v2029
    %v2320 = vunpack.c.h.b16 %v2029
    %v2321 = vunpack.c.l.b16 %v2030
    %v2322 = vunpack.c.h.b16 %v2030
    %v2323 = vunpack.c.l.b16 %v2031
    %v2324 = vunpack.c.h.b16 %v2031
    %v2325 = vunpack.c.l.b16 %v2032
    %v2326 = vunpack.c.h.b16 %v2032
    %v2327 = vunpack.c.l.b16 %v2033
    %v2328 = vunpack.c.h.b16 %v2033
    %v2329 = vunpack.c.l.b16 %v2034
    %v2330 = vunpack.c.h.b16 %v2034
    %v2331 = vunpack.c.l.b16 %v2035
    %v2332 = vunpack.c.h.b16 %v2035
    %v2333 = vunpack.c.l.b16 %v2036
    %v2334 = vunpack.c.h.b16 %v2036
    %v2335 = vunpack.c.l.b16 %v2037
    %v2336 = vunpack.c.h.b16 %v2037
    %v2337 = vunpack.c.l.b16 %v2038
    %v2338 = vunpack.c.h.b16 %v2038
    %v2339 = vunpack.c.l.b16 %v2039
    %v2340 = vunpack.c.h.b16 %v2039
    %v2341 = vunpack.c.l.b16 %v2040
    %v2342 = vunpack.c.h.b16 %v2040
    %v2343 = vunpack.c.l.b16 %v2041
    %v2344 = vunpack.c.h.b16 %v2041
    %v2345 = vunpack.c.l.b16 %v2042
    %v2346 = vunpack.c.h.b16 %v2042
    %v2347 = vunpack.c.l.b16 %v2043
    %v2348 = vunpack.c.h.b16 %v2043
    %v2349 = vunpack.c.l.b16 %v2044
    %v2350 = vunpack.c.h.b16 %v2044
    %v2351 = vunpack.c.l.b16 %v2045
    %v2352 = vunpack.c.h.b16 %v2045
    %v2353 = vunpack.c.l.b16 %v2046
    %v2354 = vunpack.c.h.b16 %v2046
    %v2355 = vunpack.c.l.b16 %v2047
    %v2356 = vunpack.c.h.b16 %v2047
    %v2357 = vunpack.c.l.b16 %v2048
    %v2358 = vunpack.c.h.b16 %v2048
    %v2359 = vunpack.c.l.b16 %v2049
    %v2360 = vunpack.c.h.b16 %v2049
    %v2361 = vunpack.c.l.b16 %v2050
    %v2362 = vunpack.c.h.b16 %v2050
    %v2363 = vunpack.c.l.b16 %v2051
    %v2364 = vunpack.c.h.b16 %v2051
    %v2365 = vunpack.c.l.b16 %v2052
    %v2366 = vunpack.c.h.b16 %v2052
    %v2367 = vunpack.c.l.b16 %v2053
    %v2368 = vunpack.c.h.b16 %v2053
    %v2369 = vunpack.c.l.b16 %v2054
    %v2370 = vunpack.c.h.b16 %v2054
    %v2371 = vunpack.c.l.b16 %v2055
    %v2372 = vunpack.c.h.b16 %v2055
    %v2373 = vunpack.c.l.b16 %v2056
    %v2374 = vunpack.c.h.b16 %v2056
    %v2375 = vunpack.c.l.b16 %v2057
    %v2376 = vunpack.c.h.b16 %v2057
    %v2377 = vunpack.c.l.b16 %v2058
    %v2378 = vunpack.c.h.b16 %v2058
    %v2379 = vunpack.c.l.b16 %v2059
    %v2380 = vunpack.c.h.b16 %v2059
    %v2381 = vunpack.c.l.b16 %v2060
    %v2382 = vunpack.c.h.b16 %v2060
    %v2383 = vunpack.c.l.b16 %v2061
    %v2384 = vunpack.c.h.b16 %v2061
    %v2385 = vunpack.c.l.b16 %v2062
    %v2386 = vunpack.c.h.b16 %v2062
    %v2387 = vunpack.c.l.b16 %v2063
    %v2388 = vunpack.c.h.b16 %v2063
    %v2389 = vunpack.c.l.b16 %v2064
    %v2390 = vunpack.c.h.b16 %v2064
    %v2391 = vunpack.c.l.b16 %v2065
    %v2392 = vunpack.c.h.b16 %v2065
    %v2393 = vunpack.c.l.b16 %v2066
    %v2394 = vunpack.c.h.b16 %v2066
    %v2395 = vunpack.c.l.b16 %v2067
    %v2396 = vunpack.c.h.b16 %v2067
    %v2397 = vunpack.c.l.b16 %v2068
    %v2398 = vunpack.c.h.b16 %v2068
    %v2399 = vunpack.c.l.b16 %v2069
    %v2400 = vunpack.c.h.b16 %v2069
    %v2401 = vunpack.c.l.b16 %v2070
    %v2402 = vunpack.c.h.b16 %v2070
    %v2403 = vunpack.c.l.b16 %v2071
    %v2404 = vunpack.c.h.b16 %v2071
    %v2405 = vunpack.c.l.b16 %v2072
    %v2406 = vunpack.c.h.b16 %v2072
    %v2407 = vunpack.c.l.b16 %v2073
    %v2408 = vunpack.c.h.b16 %v2073
    %v2409 = vunpack.c.l.b16 %v2074
    %v2410 = vunpack.c.h.b16 %v2074
    %v2411 = vunpack.c.l.b16 %v2075
    %v2412 = vunpack.c.h.b16 %v2075
    %v2413 = vunpack.c.l.b16 %v2076
    %v2414 = vunpack.c.h.b16 %v2076
    %v2415 = vunpack.c.l.b16 %v2077
    %v2416 = vunpack.c.h.b16 %v2077
    %v2417 = vunpack.c.l.b16 %v2078
    %v2418 = vunpack.c.h.b16 %v2078
    %v2419 = vunpack.c.l.b16 %v2079
    %v2420 = vunpack.c.h.b16 %v2079
    %v2421 = vunpack.c.l.b16 %v2080
    %v2422 = vunpack.c.h.b16 %v2080
    %v2423 = vunpack.c.l.b16 %v2081
    %v2424 = vunpack.c.h.b16 %v2081
    %v2425 = vunpack.c.l.b16 %v2082
    %v2426 = vunpack.c.h.b16 %v2082
    %v2427 = vunpack.c.l.b16 %v2083
    %v2428 = vunpack.c.h.b16 %v2083
    %v2429 = vunpack.c.l.b16 %v2084
    %v2430 = vunpack.c.h.b16 %v2084
    %v2431 = vunpack.c.l.b16 %v2085
    %v2432 = vunpack.c.h.b16 %v2085
    %v2433 = vunpack.c.l.b16 %v2086
    %v2434 = vunpack.c.h.b16 %v2086
    %v2435 = vunpack.c.l.b16 %v2087
    %v2436 = vunpack.c.h.b16 %v2087
    %v2437 = vunpack.c.l.b16 %v2088
    %v2438 = vunpack.c.h.b16 %v2088
    %v2439 = vunpack.c.l.b16 %v2089
    %v2440 = vunpack.c.h.b16 %v2089
    %v2441 = vunpack.c.l.b16 %v2090
    %v2442 = vunpack.c.h.b16 %v2090
    %v2443 = vunpack.c.l.b16 %v2091
    %v2444 = vunpack.c.h.b16 %v2091
    %v2445 = vunpack.c.l.b16 %v2092
    %v2446 = vunpack.c.h.b16 %v2092
    %v2447 = vunpack.c.l.b16 %v2093
    %v2448 = vunpack.c.h.b16 %v2093
    %v2449 = vunpack.c.l.b16 %v2094
    %v2450 = vunpack.c.h.b16 %v2094
    %v2451 = vunpack.c.l.b16 %v2095
    %v2452 = vunpack.c.h.b16 %v2095
    %v2453 = vunpack.c.l.b16 %v2096
    %v2454 = vunpack.c.h.b16 %v2096
    %v2455 = vunpack.c.l.b16 %v2097
    %v2456 = vunpack.c.h.b16 %v2097
    %v2457 = vunpack.c.l.b16 %v2098
    %v2458 = vunpack.c.h.b16 %v2098
    %v2459 = vunpack.c.l.b16 %v2099
    %v2460 = vunpack.c.h.b16 %v2099
    %v2461 = vunpack.c.l.b16 %v2100
    %v2462 = vunpack.c.h.b16 %v2100
    %v2463 = vunpack.c.l.b16 %v2101
    %v2464 = vunpack.c.h.b16 %v2101
    %v2465 = vunpack.c.l.b16 %v2102
    %v2466 = vunpack.c.h.b16 %v2102
    %v2467 = vunpack.c.l.b16 %v2103
    %v2468 = vunpack.c.h.b16 %v2103
    %v2469 = vunpack.c.l.b16 %v2104
    %v2470 = vunpack.c.h.b16 %v2104
    %v2471 = vunpack.c.l.b16 %v2105
    %v2472 = vunpack.c.h.b16 %v2105
    %v2473 = vunpack.c.l.b16 %v2106
    %v2474 = vunpack.c.h.b16 %v2106
    %v2475 = vunpack.c.l.b16 %v2107
    %v2476 = vunpack.c.h.b16 %v2107
    %v2477 = vunpack.c.l.b16 %v2108
    %v2478 = vunpack.c.h.b16 %v2108
    %v2479 = vunpack.c.l.b16 %v2109
    %v2480 = vunpack.c.h.b16 %v2109
    %v2481 = vunpack.c.l.b16 %v2110
    %v2482 = vunpack.c.h.b16 %v2110
    %v2483 = vunpack.c.l.b16 %v2111
    %v2484 = vunpack.c.h.b16 %v2111
    %v2485 = vunpack.c.l.b16 %v2112
    %v2486 = vunpack.c.h.b16 %v2112
    %v2487 = vunpack.c.l.b16 %v2113
    %v2488 = vunpack.c.h.b16 %v2113
    %v2489 = vunpack.c.l.b16 %v2114
    %v2490 = vunpack.c.h.b16 %v2114
    %v2491 = vunpack.c.l.b16 %v2115
    %v2492 = vunpack.c.h.b16 %v2115
    %v2493 = vunpack.c.l.b16 %v2116
    %v2494 = vunpack.c.h.b16 %v2116
    %v2495 = vunpack.c.l.b16 %v2117
    %v2496 = vunpack.c.h.b16 %v2117
    %v2497 = vunpack.c.l.b16 %v2118
    %v2498 = vunpack.c.h.b16 %v2118
    %v2499 = vunpack.c.l.b16 %v2119
    %v2500 = vunpack.c.h.b16 %v2119
    %v2501 = vunpack.c.l.b16 %v2120
    %v2502 = vunpack.c.h.b16 %v2120
    %v2503 = vunpack.c.l.b16 %v2121
    %v2504 = vunpack.c.h.b16 %v2121
    %v2505 = vunpack.c.l.b16 %v2122
    %v2506 = vunpack.c.h.b16 %v2122
    %v2507 = vunpack.c.l.b16 %v2123
    %v2508 = vunpack.c.h.b16 %v2123
    %v2509 = vunpack.c.l.b16 %v2124
    %v2510 = vunpack.c.h.b16 %v2124
    %v2511 = vunpack.c.l.b16 %v2125
    %v2512 = vunpack.c.h.b16 %v2125
    %v2513 = vunpack.c.l.b16 %v2126
    %v2514 = vunpack.c.h.b16 %v2126
    %v2515 = vunpack.c.l.b16 %v2127
    %v2516 = vunpack.c.h.b16 %v2127
    %v2517 = vunpack.c.l.b16 %v2128
    %v2518 = vunpack.c.h.b16 %v2128
    %v2519 = vunpack.c.l.b16 %v2129
    %v2520 = vunpack.c.h.b16 %v2129
    %v2521 = vunpack.c.l.b16 %v2130
    %v2522 = vunpack.c.h.b16 %v2130
    %v2523 = vunpack.c.l.b16 %v2131
    %v2524 = vunpack.c.h.b16 %v2131
    %v2525 = vunpack.c.l.b16 %v2132
    %v2526 = vunpack.c.h.b16 %v2132
    %v2527 = vunpack.c.l.b16 %v2133
    %v2528 = vunpack.c.h.b16 %v2133
    %v2529 = vunpack.c.l.b16 %v2134
    %v2530 = vunpack.c.h.b16 %v2134
    %v2531 = vunpack.c.l.b16 %v2135
    %v2532 = vunpack.c.h.b16 %v2135
    %v2533 = vunpack.c.l.b16 %v2136
    %v2534 = vunpack.c.h.b16 %v2136
    %v2535 = vunpack.c.l.b16 %v2137
    %v2536 = vunpack.c.h.b16 %v2137
    %v2537 = vunpack.c.l.b16 %v2138
    %v2538 = vunpack.c.h.b16 %v2138
    %v2539 = vunpack.c.l.b16 %v2139
    %v2540 = vunpack.c.h.b16 %v2139
    %v2541 = vunpack.c.l.b16 %v2140
    %v2542 = vunpack.c.h.b16 %v2140
    %v2543 = vunpack.c.l.b16 %v2141
    %v2544 = vunpack.c.h.b16 %v2141
    %v2545 = vunpack.c.l.b16 %v2142
    %v2546 = vunpack.c.h.b16 %v2142
    %v2547 = vunpack.c.l.b16 %v2143
    %v2548 = vunpack.c.h.b16 %v2143
    %v2549 = vunpack.c.l.b16 %v2144
    %v2550 = vunpack.c.h.b16 %v2144
    %v2551 = vpack.c.b16 %v2299, %v2295
    %v2552 = vpack.c.b16 %v2300, %v2296
    %v2553 = vpack.c.b16 %v2301, %v2297
    %v2554 = vpack.c.b16 %v2302, %v2298
    %v2555 = vpack.c.b16 %v2307, %v2303
    %v2556 = vpack.c.b16 %v2308, %v2304
    %v2557 = vpack.c.b16 %v2309, %v2305
    %v2558 = vpack.c.b16 %v2310, %v2306
    %v2559 = vpack.c.b16 %v2315, %v2311
    %v2560 = vpack.c.b16 %v2316, %v2312
    %v2561 = vpack.c.b16 %v2317, %v2313
    %v2562 = vpack.c.b16 %v2318, %v2314
    %v2563 = vpack.c.b16 %v2323, %v2319
    %v2564 = vpack.c.b16 %v2324, %v2320
    %v2565 = vpack.c.b16 %v2325, %v2321
    %v2566 = vpack.c.b16 %v2326, %v2322
    %v2567 = vpack.c.b16 %v2331, %v2327
    %v2568 = vpack.c.b16 %v2332, %v2328
    %v2569 = vpack.c.b16 %v2333, %v2329
    %v2570 = vpack.c.b16 %v2334, %v2330
    %v2571 = vpack.c.b16 %v2339, %v2335
    %v2572 = vpack.c.b16 %v2340, %v2336
    %v2573 = vpack.c.b16 %v2341, %v2337
    %v2574 = vpack.c.b16 %v2342, %v2338
    %v2575 = vpack.c.b16 %v2347, %v2343
    %v2576 = vpack.c.b16 %v2348, %v2344
    %v2577 = vpack.c.b16 %v2349, %v2345
    %v2578 = vpack.c.b16 %v2350, %v2346
    %v2579 = vpack.c.b16 %v2355, %v2351
    %v2580 = vpack.c.b16 %v2356, %v2352
    %v2581 = vpack.c.b16 %v2357, %v2353
    %v2582 = vpack.c.b16 %v2358, %v2354
    %v2583 = vpack.c.b16 %v2363, %v2359
    %v2584 = vpack.c.b16 %v2364, %v2360
    %v2585 = vpack.c.b16 %v2365, %v2361
    %v2586 = vpack.c.b16 %v2366, %v2362
    %v2587 = vpack.c.b16 %v2371, %v2367
    %v2588 = vpack.c.b16 %v2372, %v2368
    %v2589 = vpack.c.b16 %v2373, %v2369
    %v2590 = vpack.c.b16 %v2374, %v2370
    %v2591 = vpack.c.b16 %v2379, %v2375
    %v2592 = vpack.c.b16 %v2380, %v2376
    %v2593 = vpack.c.b16 %v2381, %v2377
    %v2594 = vpack.c.b16 %v2382, %v2378
    %v2595 = vpack.c.b16 %v2387, %v2383
    %v2596 = vpack.c.b16 %v2388, %v2384
    %v2597 = vpack.c.b16 %v2389, %v2385
    %v2598 = vpack.c.b16 %v2390, %v2386
    %v2599 = vpack.c.b16 %v2395, %v2391
    %v2600 = vpack.c.b16 %v2396, %v2392
    %v2601 = vpack.c.b16 %v2397, %v2393
    %v2602 = vpack.c.b16 %v2398, %v2394
    %v2603 = vpack.c.b16 %v2403, %v2399
    %v2604 = vpack.c.b16 %v2404, %v2400
    %v2605 = vpack.c.b16 %v2405, %v2401
    %v2606 = vpack.c.b16 %v2406, %v2402
    %v2607 = vpack.c.b16 %v2411, %v2407
    %v2608 = vpack.c.b16 %v2412, %v2408
    %v2609 = vpack.c.b16 %v2413, %v2409
    %v2610 = vpack.c.b16 %v2414, %v2410
    %v2611 = vpack.c.b16 %v2419, %v2415
    %v2612 = vpack.c.b16 %v2420, %v2416
    %v2613 = vpack.c.b16 %v2421, %v2417
    %v2614 = vpack.c.b16 %v2422, %v2418
    %v2615 = vpack.c.b16 %v2427, %v2423
    %v2616 = vpack.c.b16 %v2428, %v2424
    %v2617 = vpack.c.b16 %v2429, %v2425
    %v2618 = vpack.c.b16 %v2430, %v2426
    %v2619 = vpack.c.b16 %v2435, %v2431
    %v2620 = vpack.c.b16 %v2436, %v2432
    %v2621 = vpack.c.b16 %v2437, %v2433
    %v2622 = vpack.c.b16 %v2438, %v2434
    %v2623 = vpack.c.b16 %v2443, %v2439
    %v2624 = vpack.c.b16 %v2444, %v2440
    %v2625 = vpack.c.b16 %v2445, %v2441
    %v2626 = vpack.c.b16 %v2446, %v2442
    %v2627 = vpack.c.b16 %v2451, %v2447
    %v2628 = vpack.c.b16 %v2452, %v2448
    %v2629 = vpack.c.b16 %v2453, %v2449
    %v2630 = vpack.c.b16 %v2454, %v2450
    %v2631 = vpack.c.b16 %v2459, %v2455
    %v2632 = vpack.c.b16 %v2460, %v2456
    %v2633 = vpack.c.b16 %v2461, %v2457
    %v2634 = vpack.c.b16 %v2462, %v2458
    %v2635 = vpack.c.b16 %v2467, %v2463
    %v2636 = vpack.c.b16 %v2468, %v2464
    %v2637 = vpack.c.b16 %v2469, %v2465
    %v2638 = vpack.c.b16 %v2470, %v2466
    %v2639 = vpack.c.b16 %v2475, %v2471
    %v2640 = vpack.c.b16 %v2476, %v2472
    %v2641 = vpack.c.b16 %v2477, %v2473
    %v2642 = vpack.c.b16 %v2478, %v2474
    %v2643 = vpack.c.b16 %v2483, %v2479
    %v2644 = vpack.c.b16 %v2484, %v2480
    %v2645 = vpack.c.b16 %v2485, %v2481
    %v2646 = vpack.c.b16 %v2486, %v2482
    %v2647 = vpack.c.b16 %v2491, %v2487
    %v2648 = vpack.c.b16 %v2492, %v2488
    %v2649 = vpack.c.b16 %v2493, %v2489
    %v2650 = vpack.c.b16 %v2494, %v2490
    %v2651 = vpack.c.b16 %v2499, %v2495
    %v2652 = vpack.c.b16 %v2500, %v2496
    %v2653 = vpack.c.b16 %v2501, %v2497
    %v2654 = vpack.c.b16 %v2502, %v2498
    %v2655 = vpack.c.b16 %v2507, %v2503
    %v2656 = vpack.c.b16 %v2508, %v2504
    %v2657 = vpack.c.b16 %v2509, %v2505
    %v2658 = vpack.c.b16 %v2510, %v2506
    %v2659 = vpack.c.b16 %v2515, %v2511
    %v2660 = vpack.c.b16 %v2516, %v2512
    %v2661 = vpack.c.b16 %v2517, %v2513
    %v2662 = vpack.c.b16 %v2518, %v2514
    %v2663 = vpack.c.b16 %v2523, %v2519
    %v2664 = vpack.c.b16 %v2524, %v2520
    %v2665 = vpack.c.b16 %v2525, %v2521
    %v2666 = vpack.c.b16 %v2526, %v2522
    %v2667 = vpack.c.b16 %v2531, %v2527
    %v2668 = vpack.c.b16 %v2532, %v2528
    %v2669 = vpack.c.b16 %v2533, %v2529
    %v2670 = vpack.c.b16 %v2534, %v2530
    %v2671 = vpack.c.b16 %v2539, %v2535
    %v2672 = vpack.c.b16 %v2540, %v2536
    %v2673 = vpack.c.b16 %v2541, %v2537
    %v2674 = vpack.c.b16 %v2542, %v2538
    %v2675 = vpack.c.b16 %v2547, %v2543
    %v2676 = vpack.c.b16 %v2548, %v2544
    %v2677 = vpack.c.b16 %v2549, %v2545
    %v2678 = vpack.c.b16 %v2550, %v2546
    %2807 = vmatprep.subr.bf16.mxu0 %v2552
    %2808 = vmatpush1.bf16.msra.mxu0 %v2551
    %2809 = vmatprep.subr.bf16.mxu0 %v2556
    %2810 = vmatpush1.bf16.msra.mxu0 %v2555
    %2811 = vmatprep.subr.bf16.mxu0 %v2560
    %2812 = vmatpush1.bf16.msra.mxu0 %v2559
    %2813 = vmatprep.subr.bf16.mxu0 %v2564
    %2814 = vmatpush1.bf16.msra.mxu0 %v2563
    %2815 = vmatprep.subr.bf16.mxu0 %v2568
    %2816 = vmatpush1.bf16.msra.mxu0 %v2567
    %2817 = vmatprep.subr.bf16.mxu0 %v2572
    %2818 = vmatpush1.bf16.msra.mxu0 %v2571
    %2819 = vmatprep.subr.bf16.mxu0 %v2576
    %2820 = vmatpush1.bf16.msra.mxu0 %v2575
    %2821 = vmatprep.subr.bf16.mxu0 %v2580
    %2822 = vmatpush1.bf16.msra.mxu0 %v2579
    %2823 = vmatprep.subr.bf16.mxu0 %v2584
    %2824 = vmatpush1.bf16.msra.mxu0 %v2583
    %2825 = vmatprep.subr.bf16.mxu0 %v2588
    %2826 = vmatpush1.bf16.msra.mxu0 %v2587
    %2827 = vmatprep.subr.bf16.mxu0 %v2592
    %2828 = vmatpush1.bf16.msra.mxu0 %v2591
    %2829 = vmatprep.subr.bf16.mxu0 %v2596
    %2830 = vmatpush1.bf16.msra.mxu0 %v2595
    %2831 = vmatprep.subr.bf16.mxu0 %v2600
    %2832 = vmatpush1.bf16.msra.mxu0 %v2599
    %2833 = vmatprep.subr.bf16.mxu0 %v2604
    %2834 = vmatpush1.bf16.msra.mxu0 %v2603
    %2835 = vmatprep.subr.bf16.mxu0 %v2608
    %2836 = vmatpush1.bf16.msra.mxu0 %v2607
    %2837 = vmatprep.subr.bf16.mxu0 %v2612
    %2838 = vmatpush1.bf16.msra.mxu0 %v2611
    %2839 = vmatprep.mubr.bf16.mxu0 %v2014
    %2840 = vmatmul.mubr.bf16.gmra.mrb[0].mxu0 %v2013
    %v2841 = vpop.f32.mrb[0].mxu0
    %v2842 = vadd.f32 %v2150, %v2841
    %v2843 = vpop.f32.mrb[0].mxu0
    %v2844 = vadd.f32 %v2154, %v2843
    %v2845 = vpop.f32.mrb[0].mxu0
    %v2846 = vpop.f32.mrb[0].mxu0
    %2847 = vdwg.mxu0
    %2848 = vmatprep.subr.bf16.mxu0 %v2616
    %2849 = vmatpush1.bf16.msra.mxu0 %v2615
    %2850 = vmatprep.subr.bf16.mxu0 %v2620
    %2851 = vmatpush1.bf16.msra.mxu0 %v2619
    %2852 = vmatprep.subr.bf16.mxu0 %v2624
    %2853 = vmatpush1.bf16.msra.mxu0 %v2623
    %2854 = vmatprep.subr.bf16.mxu0 %v2628
    %2855 = vmatpush1.bf16.msra.mxu0 %v2627
    %2856 = vmatprep.subr.bf16.mxu0 %v2632
    %2857 = vmatpush1.bf16.msra.mxu0 %v2631
    %2858 = vmatprep.subr.bf16.mxu0 %v2636
    %2859 = vmatpush1.bf16.msra.mxu0 %v2635
    %2860 = vmatprep.subr.bf16.mxu0 %v2640
    %2861 = vmatpush1.bf16.msra.mxu0 %v2639
    %2862 = vmatprep.subr.bf16.mxu0 %v2644
    %2863 = vmatpush1.bf16.msra.mxu0 %v2643
    %2864 = vmatprep.subr.bf16.mxu0 %v2648
    %2865 = vmatpush1.bf16.msra.mxu0 %v2647
    %2866 = vmatprep.subr.bf16.mxu0 %v2652
    %2867 = vmatpush1.bf16.msra.mxu0 %v2651
    %2868 = vmatprep.subr.bf16.mxu0 %v2656
    %2869 = vmatpush1.bf16.msra.mxu0 %v2655
    %2870 = vmatprep.subr.bf16.mxu0 %v2660
    %2871 = vmatpush1.bf16.msra.mxu0 %v2659
    %2872 = vmatprep.subr.bf16.mxu0 %v2664
    %2873 = vmatpush1.bf16.msra.mxu0 %v2663
    %2874 = vmatprep.subr.bf16.mxu0 %v2668
    %2875 = vmatpush1.bf16.msra.mxu0 %v2667
    %2876 = vmatprep.subr.bf16.mxu0 %v2672
    %2877 = vmatpush1.bf16.msra.mxu0 %v2671
    %2878 = vmatprep.subr.bf16.mxu0 %v2676
    %2879 = vmatpush1.bf16.msra.mxu0 %v2675
    %2880 = vmatprep.mubr.bf16.mxu0 %v2016
    %2881 = vmatmul.mubr.bf16.gmra.mrb[0].mxu0 %v2015
    %v2882 = vpop.f32.mrb[0].mxu0
    %v2883 = vadd.f32 %v2842, %v2882
    %v2884 = vpop.f32.mrb[0].mxu0
    %v2885 = vadd.f32 %v2844, %v2884
    %v2886 = vpop.f32.mrb[0].mxu0
    %v2887 = vpop.f32.mrb[0].mxu0
    %2888 = vdwg.mxu0
    %2889 = vmatprep.subr.bf16.mxu0 %v2554
    %2890 = vmatpush1.bf16.msra.mxu0 %v2553
    %2891 = vmatprep.subr.bf16.mxu0 %v2558
    %2892 = vmatpush1.bf16.msra.mxu0 %v2557
    %2893 = vmatprep.subr.bf16.mxu0 %v2562
    %2894 = vmatpush1.bf16.msra.mxu0 %v2561
    %2895 = vmatprep.subr.bf16.mxu0 %v2566
    %2896 = vmatpush1.bf16.msra.mxu0 %v2565
    %2897 = vmatprep.subr.bf16.mxu0 %v2570
    %2898 = vmatpush1.bf16.msra.mxu0 %v2569
    %2899 = vmatprep.subr.bf16.mxu0 %v2574
    %2900 = vmatpush1.bf16.msra.mxu0 %v2573
    %2901 = vmatprep.subr.bf16.mxu0 %v2578
    %2902 = vmatpush1.bf16.msra.mxu0 %v2577
    %2903 = vmatprep.subr.bf16.mxu0 %v2582
    %2904 = vmatpush1.bf16.msra.mxu0 %v2581
    %2905 = vmatprep.subr.bf16.mxu0 %v2586
    %2906 = vmatpush1.bf16.msra.mxu0 %v2585
    %2907 = vmatprep.subr.bf16.mxu0 %v2590
    %2908 = vmatpush1.bf16.msra.mxu0 %v2589
    %2909 = vmatprep.subr.bf16.mxu0 %v2594
    %2910 = vmatpush1.bf16.msra.mxu0 %v2593
    %2911 = vmatprep.subr.bf16.mxu0 %v2598
    %2912 = vmatpush1.bf16.msra.mxu0 %v2597
    %2913 = vmatprep.subr.bf16.mxu0 %v2602
    %2914 = vmatpush1.bf16.msra.mxu0 %v2601
    %2915 = vmatprep.subr.bf16.mxu0 %v2606
    %2916 = vmatpush1.bf16.msra.mxu0 %v2605
    %2917 = vmatprep.subr.bf16.mxu0 %v2610
    %2918 = vmatpush1.bf16.msra.mxu0 %v2609
    %2919 = vmatprep.subr.bf16.mxu0 %v2614
    %2920 = vmatpush1.bf16.msra.mxu0 %v2613
    %2921 = vmatprep.mubr.bf16.mxu0 %v2014
    %2922 = vmatmul.mubr.bf16.gmra.mrb[0].mxu0 %v2013
    %v2923 = vpop.f32.mrb[0].mxu0
    %v2924 = vadd.f32 %v2158, %v2923
    %v2925 = vpop.f32.mrb[0].mxu0
    %v2926 = vadd.f32 %v2162, %v2925
    %v2927 = vpop.f32.mrb[0].mxu0
    %v2928 = vpop.f32.mrb[0].mxu0
    %2929 = vdwg.mxu0
    %2930 = vmatprep.subr.bf16.mxu0 %v2618
    %2931 = vmatpush1.bf16.msra.mxu0 %v2617
    %2932 = vmatprep.subr.bf16.mxu0 %v2622
    %2933 = vmatpush1.bf16.msra.mxu0 %v2621
    %2934 = vmatprep.subr.bf16.mxu0 %v2626
    %2935 = vmatpush1.bf16.msra.mxu0 %v2625
    %2936 = vmatprep.subr.bf16.mxu0 %v2630
    %2937 = vmatpush1.bf16.msra.mxu0 %v2629
    %2938 = vmatprep.subr.bf16.mxu0 %v2634
    %2939 = vmatpush1.bf16.msra.mxu0 %v2633
    %2940 = vmatprep.subr.bf16.mxu0 %v2638
    %2941 = vmatpush1.bf16.msra.mxu0 %v2637
    %2942 = vmatprep.subr.bf16.mxu0 %v2642
    %2943 = vmatpush1.bf16.msra.mxu0 %v2641
    %2944 = vmatprep.subr.bf16.mxu0 %v2646
    %2945 = vmatpush1.bf16.msra.mxu0 %v2645
    %2946 = vmatprep.subr.bf16.mxu0 %v2650
    %2947 = vmatpush1.bf16.msra.mxu0 %v2649
    %2948 = vmatprep.subr.bf16.mxu0 %v2654
    %2949 = vmatpush1.bf16.msra.mxu0 %v2653
    %2950 = vmatprep.subr.bf16.mxu0 %v2658
    %2951 = vmatpush1.bf16.msra.mxu0 %v2657
    %2952 = vmatprep.subr.bf16.mxu0 %v2662
    %2953 = vmatpush1.bf16.msra.mxu0 %v2661
    %2954 = vmatprep.subr.bf16.mxu0 %v2666
    %2955 = vmatpush1.bf16.msra.mxu0 %v2665
    %2956 = vmatprep.subr.bf16.mxu0 %v2670
    %2957 = vmatpush1.bf16.msra.mxu0 %v2669
    %2958 = vmatprep.subr.bf16.mxu0 %v2674
    %2959 = vmatpush1.bf16.msra.mxu0 %v2673
    %2960 = vmatprep.subr.bf16.mxu0 %v2678
    %2961 = vmatpush1.bf16.msra.mxu0 %v2677
    %2962 = vmatprep.mubr.bf16.mxu0 %v2016
    %2963 = vmatmul.mubr.bf16.gmra.mrb[0].mxu0 %v2015
    %v2964 = vpop.f32.mrb[0].mxu0
    %v2965 = vadd.f32 %v2924, %v2964
    %v2966 = vpop.f32.mrb[0].mxu0
    %v2967 = vadd.f32 %v2926, %v2966
    %v2968 = vpop.f32.mrb[0].mxu0
    %v2969 = vpop.f32.mrb[0].mxu0
    %2970 = vdwg.mxu0
    %v2971 = vtanh.pop %v2883
    %v2972 = vtanh.pop %v2885
    %v2973 = vxor.u32 %v2965, 2147483648
    %v2974 = vxor.u32 %v2967, 2147483648
    %v2975 = vmul.f32 %v2973, 1.442695
    %v2976 = vpow.pop %v2975
    %v2977 = vmul.f32 %v2974, 1.442695
    %v2978 = vpow.pop %v2977
    %v2979 = vadd.f32 %v2976, 1.0
    %v2980 = vadd.f32 %v2978, 1.0
    %v2981 = vrcp.pop %v2979
    %v2982 = vmul.f32 1.0, %v2981
    %v2983 = vrcp.pop %v2980
    %v2984 = vmul.f32 1.0, %v2983
    %v2985 = vmul.f32 %v2971, %v2982
    %v2986 = vmul.f32 %v2972, %v2984
    %v2987 = vld [vmem:[%s6] sm:$0x3]
    %v2989 = vlaneseq
    %v2990 = vshrl.u32 %v2989, 7
    %v2991 = vsub.s32 0, %v2990
    %v2992 = vrot.slane %v2987, %v2991
    %v2993 = vlaneseq
    %v2994 = vshrl.u32 %v2993, 7
    %v2995 = vsub.s32 1, %v2994
    %v2996 = vrot.slane %v2987, %v2995
    %v2999 = vmul.f32 %v2985, %v2992
    %v3000 = vmul.f32 %v2986, %v2996
    %v3001 = vadd.f32 %v2999, %v3000
    %3002 = vadd.xlane.f32.xlu0 %v3001
    %v3003 = vpop.xlane.xlu0 %3002
    %v3004 = vld [vmem:[#allocation7] sm:$0x1]
    %v3006 = vlaneseq
    %v3007 = vshrl.u32 %v3006, 7
    %v3008 = vsub.s32 0, %v3007
    %v3009 = vrot.slane %v3004, %v3008
    %v3011 = vadd.f32 %v3003, %v3009
    %vm3012 = vcmask 7168
    %3013 = vst.msk [vmem:[%s10] sm:$0xff] %vm3012, %v3011
    %s3014 = smul.u32 0, 8
    %v3015 = vlaneseq
    %v3016 = vshrl.u32 %v3015, 7
    %v3017 = vstv %s3014
    %v3018 = vadd.s32 %v3017, %v3016
    %s3019 = sld [smem:[#allocation6]]
    %v3020 = vstv %s3019
    %vm3021 = vcmp.lt.s32.totalorder %v3018, %v3020
    %v3022 = vsel %vm3021, 1, 0
    %vm3023 = vcmp.eq.s32.totalorder %v3022, 1
    %v3024 = vsel %vm3023, %v2009, 0.0
    %v3025 = vsel %vm3023, %v2010, 0.0
    %v3026 = vsel %vm3023, %v2011, 0.0
    %v3027 = vsel %vm3023, %v2012, 0.0
    %v3028 = vsel %vm3021, %v3011, -inf
    %v3029 = vld [vmem:[#allocation2] sm:$0x1]
    %v3030 = vsel %vm3012, %v3028, -inf
    %v3031 = vrot.slane %v3030, 4
    %v3032 = vmax.f32 %v3030, %v3031
    %v3033 = vrot.slane %v3032, 2
    %v3034 = vmax.f32 %v3032, %v3033
    %v3035 = vrot.slane %v3034, 1
    %v3036 = vmax.f32 %v3034, %v3035
    %v3037 = vmax.f32 %v3029, %v3036
    %v3038 = vsub.f32 %v3029, %v3037
    %v3039 = vmul.f32 %v3038, 1.442695
    %v3040 = vpow.pop %v3039
    %v3042 = vlaneseq
    %v3043 = vshrl.u32 %v3042, 7
    %v3044 = vsub.s32 0, %v3043
    %v3045 = vrot.slane %v3037, %v3044
    %v3047 = vsub.f32 %v3028, %v3045
    %v3048 = vmul.f32 %v3047, 1.442695
    %v3049 = vpow.pop %v3048
    %v3050 = vld [vmem:[#allocation3] sm:$0x1]
    %v3051 = vmul.f32 %v3040, %v3050
    %v3052 = vsel %vm3012, %v3049, 0.0
    %v3053 = vrot.slane %v3052, 4
    %v3054 = vadd.f32 %v3052, %v3053
    %v3055 = vrot.slane %v3054, 2
    %v3056 = vadd.f32 %v3054, %v3055
    %v3057 = vrot.slane %v3056, 1
    %v3058 = vadd.f32 %v3056, %v3057
    %v3059 = vadd.f32 %v3051, %v3058
    %vm3060 = vcmask 0
    %3061 = vst.msk [vmem:[#allocation3] sm:$0x1] %vm3060, %v3059
    %v3062 = vld [vmem:[#allocation4] sm:$0xf]
    %3064 = vset.pattern.permute.xlu0 0
    %3065 = vperm.xlu0 %3064, %v3040
    %v3066 = vpop.permute.xlu0 %3065
    %v3068 = vlaneseq
    %v3069 = vshrl.u32 %v3068, 7
    %v3070 = vsub.s32 0, %v3069
    %v3071 = vrot.slane %v3066, %v3070
    %v3072 = vmul.f32 %v3071, %v3062
    %3074 = vset.pattern.permute.xlu0 0
    %3075 = vperm.xlu0 %3074, %v3049
    %v3076 = vpop.permute.xlu0 %3075
    %v3078 = vmul.f32 %v3076, %v3024
    %v3079 = vmul.f32 %v3076, %v3025
    %v3080 = vmul.f32 %v3076, %v3026
    %v3081 = vmul.f32 %v3076, %v3027
    %v3082 = vrot.slane %v3078, 4
    %v3083 = vadd.f32 %v3078, %v3082
    %v3084 = vrot.slane %v3083, 2
    %v3085 = vadd.f32 %v3083, %v3084
    %v3086 = vrot.slane %v3085, 1
    %v3087 = vadd.f32 %v3085, %v3086
    %v3088 = vrot.slane %v3079, 4
    %v3089 = vadd.f32 %v3079, %v3088
    %v3090 = vrot.slane %v3089, 2
    %v3091 = vadd.f32 %v3089, %v3090
    %v3092 = vrot.slane %v3091, 1
    %v3093 = vadd.f32 %v3091, %v3092
    %v3094 = vrot.slane %v3080, 4
    %v3095 = vadd.f32 %v3080, %v3094
    %v3096 = vrot.slane %v3095, 2
    %v3097 = vadd.f32 %v3095, %v3096
    %v3098 = vrot.slane %v3097, 1
    %v3099 = vadd.f32 %v3097, %v3098
    %v3100 = vrot.slane %v3081, 4
    %v3101 = vadd.f32 %v3081, %v3100
    %v3102 = vrot.slane %v3101, 2
    %v3103 = vadd.f32 %v3101, %v3102
    %v3104 = vrot.slane %v3103, 1
    %v3105 = vadd.f32 %v3103, %v3104
    %v3110 = vcombine.low %v3087, %v3093
    %v3111 = vcombine.low %v3099, %v3105
    %v3113 = vunpack.c.l.s4 1966171168
    %v3114 = vunpack.c.0.s8 %v3113
    %v3115 = vlaneseq
    %v3116 = vshrl.u32 %v3115, 7
    %v3117 = vsub.s32 %v3114, %v3116
    %v3118 = vrot.slane %v3110, %v3117
    %v3120 = vunpack.c.l.s4 1966171168
    %v3121 = vunpack.c.0.s8 %v3120
    %v3122 = vlaneseq
    %v3123 = vshrl.u32 %v3122, 7
    %v3124 = vsub.s32 %v3121, %v3123
    %v3125 = vrot.slane %v3111, %v3124
    %v3126 = vcombine.low %v3118, %v3125
    %v3128 = vunpack.c.l.s4 1966171168
    %v3129 = vunpack.c.0.s8 %v3128
    %v3130 = vlaneseq
    %v3131 = vshrl.u32 %v3130, 7
    %v3132 = vsub.s32 %v3129, %v3131
    %v3133 = vrot.slane %v3126, %v3132
    %v3135 = vadd.f32 %v3072, %v3133
    %v3136 = vlaneseq
    %vm3137 = vcmp.ge.s32.totalorder %v3136, 0
    %vm3138 = vcmp.lt.s32.totalorder %v3136, 512
    %vm3139 = vmand %vm3137, %vm3138
    %3140 = vst.msk [vmem:[#allocation4] sm:$0xf] %vm3139, %v3135
    %3141 = vst.msk [vmem:[#allocation2] sm:$0x1] %vm3060, %v3037
    // Predicated region
    $region58: #{mil_fc_reg_att.1} parent=1 // pred_check
      %p3142 = pneg %p95
    $region59: #{mil_fc_reg_att.1} parent=1 // pred_check_branch
      %3144 = sbr.rel (%p3142) target = $region61
    $region60: #{mil_fc_reg_att.1} parent=1 // pred_region
      %v3145 = vld [vmem:[#allocation3] sm:$0x1]
      %v3146 = vrcp.pop %v3145
      %v3147 = vld [vmem:[#allocation4] sm:$0xf]
      %3149 = vset.pattern.permute.xlu0 0
      %3150 = vperm.xlu0 %3149, %v3146
      %v3151 = vpop.permute.xlu0 %3150
      %v3153 = vlaneseq
      %v3154 = vshrl.u32 %v3153, 7
      %v3155 = vsub.s32 0, %v3154
      %v3156 = vrot.slane %v3151, %v3155
      %v3157 = vmul.f32 %v3147, %v3156
      %3158 = vst.msk [vmem:[#allocation17] sm:$0xf] %vm3139, %v3157
      %v3159 = vld [vmem:[#allocation15] sm:$0xf]
      %v3160 = vmul.f32 %v3157, %v3159
      %v3162 = vlaneseq
      %v3163 = vshrl.u32 %v3162, 7
      %v3164 = vsub.s32 0, %v3163
      %v3165 = vrot.slane %v3160, %v3164
      %v3166 = vlaneseq
      %v3167 = vshrl.u32 %v3166, 7
      %v3168 = vsub.s32 1, %v3167
      %v3169 = vrot.slane %v3160, %v3168
      %v3170 = vlaneseq
      %v3171 = vshrl.u32 %v3170, 7
      %v3172 = vsub.s32 2, %v3171
      %v3173 = vrot.slane %v3160, %v3172
      %v3174 = vlaneseq
      %v3175 = vshrl.u32 %v3174, 7
      %v3176 = vsub.s32 3, %v3175
      %v3177 = vrot.slane %v3160, %v3176
      %vm3182 = vcmask 1040384
      %v3183 = vsel %vm3182, %v3165, 0.0
      %v3184 = vsel %vm3182, %v3169, 0.0
      %v3185 = vadd.f32 %v3183, %v3184
      %v3186 = vsel %vm3182, %v3173, 0.0
      %v3187 = vadd.f32 %v3185, %v3186
      %v3188 = vsel %vm3182, %v3177, 0.0
      %v3189 = vadd.f32 %v3187, %v3188
      %3190 = vadd.xlane.f32.xlu0 %v3189
      %v3191 = vpop.xlane.xlu0 %3190
      %v3192 = vld [vmem:[#allocation8] sm:$0x1]
      %v3193 = vadd.f32 %v3191, %v3192
      %3194 = vst.msk [vmem:[#allocation18] sm:$0x1] %vm3060, %v3193
      %v3195 = vmul.f32 %v3193, 1.442695
      %v3196 = vpow.pop %v3195
      %3197 = vst.msk [vmem:[#allocation20] sm:$0x1] %vm3060, %v3196
    $region61: #{mil_fc_reg_att.1} parent=1 // pred_fallthru
      _
    // Predicated region
    $region62: #{mil_fc_reg_att.1} parent=1 // pred_check
      _
    $region63: #{mil_fc_reg_att.1} parent=1 // pred_check_branch
      %3199 = sbr.rel (0) target = $region65
    $region64: #{mil_fc_reg_att.1} parent=1 // pred_region
      _
    $region65: #{mil_fc_reg_att.1} parent=1 // pred_fallthru
      _
    // Predicated region
    $region66: #{mil_fc_reg_att.1} parent=1 // pred_check
      _
    $region67: #{mil_fc_reg_att.1} parent=1 // pred_check_branch
      %3201 = sbr.rel (0) target = $region69
    $region68: #{mil_fc_reg_att.1} parent=1 // pred_region
      %s3203 = ssub.s32 64, 64
      %3204 = vsyncadd [#allocation11], %s3203
      %s3206 = sshll.u32 [#allocation17], 4
      %s3207 = int_to_ptr.vmem [resolvable:$true] %s3206
      %3209 = dma.vmem_to_hbm [thread:$0]  %s3207, 64, %s11, [#allocation11]
    $region69: #{mil_fc_reg_att.1} parent=1 // pred_fallthru
      _
    // Predicated region
    $region70: #{mil_fc_reg_att.1} parent=1 // pred_check
      _
    $region71: #{mil_fc_reg_att.1} parent=1 // pred_check_branch
      %3211 = sbr.rel (0) target = $region73
    $region72: #{mil_fc_reg_att.1} parent=1 // pred_region
      %s3213 = ssub.s32 16, 16
      %3214 = vsyncadd [#allocation19], %s3213
      %s3216 = sshll.u32 [#allocation18], 4
      %s3217 = int_to_ptr.vmem [resolvable:$true] %s3216
      %3219 = dma.vmem_to_hbm [thread:$0]  %s3217, 16, %s12, [#allocation19]
    $region73: #{mil_fc_reg_att.1} parent=1 // pred_fallthru
      _
    // Predicated region
    $region74: #{mil_fc_reg_att.1} parent=1 // pred_check
      _
    $region75: #{mil_fc_reg_att.1} parent=1 // pred_check_branch
      %3221 = sbr.rel (0) target = $region77
    $region76: #{mil_fc_reg_att.1} parent=1 // pred_region
      %s3223 = ssub.s32 16, 16
      %3224 = vsyncadd [#allocation19], %s3223
      %s3226 = sshll.u32 [#allocation20], 4
      %s3227 = int_to_ptr.vmem [resolvable:$true] %s3226
      %3229 = dma.vmem_to_hbm [thread:$0]  %s3227, 16, %s13, [#allocation19]
    $region77: #{mil_fc_reg_att.1} parent=1 // pred_fallthru
      _
    // Predicated region
    $region78: #{mil_fc_reg_att.1} parent=1 // pred_check
      _
    $region79: #{mil_fc_reg_att.1} parent=1 // pred_check_branch
      %3231 = sbr.rel (0) target = $region81
    $region80: #{mil_fc_reg_att.1} parent=1 // pred_region
      _
    $region81: #{mil_fc_reg_att.1} parent=1 // pred_fallthru
      _
    // Predicated region
    $region82: #{mil_fc_reg_att.1} parent=1 // pred_check
      _
    $region83: #{mil_fc_reg_att.1} parent=1 // pred_check_branch
      %3233 = sbr.rel (0) target = $region85
    $region84: #{mil_fc_reg_att.1} parent=1 // pred_region
      %3234 = dma.done [#allocation11], 64
    $region85: #{mil_fc_reg_att.1} parent=1 // pred_fallthru
      _
    // Predicated region
    $region86: #{mil_fc_reg_att.1} parent=1 // pred_check
      _
    $region87: #{mil_fc_reg_att.1} parent=1 // pred_check_branch
      %3236 = sbr.rel (0) target = $region89
    $region88: #{mil_fc_reg_att.1} parent=1 // pred_region
      %3237 = dma.done [#allocation19], 16
    $region89: #{mil_fc_reg_att.1} parent=1 // pred_fallthru
      _
    // Predicated region
    $region90: #{mil_fc_reg_att.1} parent=1 // pred_check
      _
    $region91: #{mil_fc_reg_att.1} parent=1 // pred_check_branch
      %3239 = sbr.rel (0) target = $region93
    $region92: #{mil_fc_reg_att.1} parent=1 // pred_region
      %3240 = dma.done [#allocation19], 16
    $region93: #{mil_fc_reg_att.1} parent=1 // pred_fallthru
      _
    %3241 = vsyncpa [#allocation10], 1
    %3242 = vsyncpa [#allocation13], 1
    %3243 = vsyncpa [#allocation16], 1
    %3244 = vsyncpa [#allocation11], 1
    %3245 = vsyncpa [#allocation19], 1

</llo_original>
